<compile_context>
chip_gen: v6e
topology: v6e:2x2x1
jax: 0.10.0
libtpu: 0.0.40
codegen_flags: <defaults>
</compile_context>

<pallas_src>
import functools

import jax
import jax.numpy as jnp
import numpy as np
from jax.experimental import pallas as pl
from jax.experimental.pallas import tpu as pltpu


def _attn_gumbel_kernel(heads, tq, mxu_dtype,
                        x_ref, wqkv_ref, bqkv_ref, wproj_ref, bproj_ref,
                        wdu_ref, bdu_ref, thr_ref,
                        out_ref, attn_ref, unc_ref,
                        q_scr, kT_scr, v_scr):
    """Grid = (batch, query-tile). qkv is computed once per batch into VMEM scratch."""
    qt = pl.program_id(1)
    H = heads
    _, N, C = x_ref.shape
    hd = C // H
    scale = float(hd) ** -0.5
    cd = mxu_dtype

    # --- once per batch element: fused qkv projection into persistent VMEM scratch ---
    @pl.when(qt == 0)
    def _():
        x = x_ref[0]                                                        # (N, C)
        qkv = jnp.dot(x.astype(cd), wqkv_ref[...].astype(cd),
                      preferred_element_type=jnp.float32) + bqkv_ref[...]   # (N, 3C)
        # softmax scale folded into q (w_du is pre-divided by `scale` on the host).
        q_scr[...] = qkv[:, 0 * C:1 * C] * scale
        # k stored transposed once per batch so every q-tile gets MXU-natural (tq,hd)@(hd,N).
        kT_scr[...] = qkv[:, 1 * C:2 * C].T
        v_scr[...] = qkv[:, 2 * C:3 * C]

    row0 = pl.multiple_of(qt * tq, tq)
    q_tile = q_scr[pl.ds(row0, tq), :]                                      # (tq, C)

    # --- per-head scores from contiguous column/row slices: no head-axis transposes ---
    s_list = []
    for h in range(H):
        q_h = q_tile[:, h * hd:(h + 1) * hd]                                # (tq, hd) lane slice
        kT_h = kT_scr[h * hd:(h + 1) * hd, :]                               # (hd, N) sublane slice
        s_list.append(jnp.dot(q_h.astype(cd), kT_h.astype(cd),
                              preferred_element_type=jnp.float32))          # (tq, N)
    s = jnp.stack(s_list, axis=0)                                           # (H, tq, N) scaled scores

    # --- softmax over keys == attn_mean ---
    m = jnp.max(s, axis=-1, keepdims=True)
    e = jnp.exp(s - m)
    denom = jnp.sum(e, axis=-1, keepdims=True)
    attn_mean = e * (1.0 / denom)
    attn_ref[0] = attn_mean.astype(attn_ref.dtype)

    # --- data_uncertainty 1x1 conv over heads: H^2 broadcast-FMAs on the VPU ---
    # (SMEM scalar weights; avoids the (H, N*N) reshape/relayout and a <7%-utilized MXU matmul)
    unc_list = []
    for o in range(H):
        acc = s_list[0] * wdu_ref[o, 0]
        for h in range(1, H):
            acc = acc + s_list[h] * wdu_ref[o, h]
        acc = acc + bdu_ref[o]
        unc_list.append((jnp.tanh(acc) + 1.0) * 0.5)     # norm_uncertainty; log(exp(.)) == id
    unc = jnp.stack(unc_list, axis=0)                                       # (H, tq, N)
    unc_ref[0] = unc.astype(unc_ref.dtype)

    # --- hard gumbel mask (forward value of F.gumbel_softmax(..., hard=True)) ---
    #   keep  <=>  (1 - unc) + g1 > unc + g0  <=>  thr > unc, thr = (g1 - g0 + 1)/2
    thr = thr_ref[0].astype(jnp.float32)
    attn = jnp.where(thr > unc, attn_mean, 0.0)
    # attn_drop: identity.

    # --- context per head, assembled along lanes (== (N, H, hd) head-major columns) ---
    ctx_list = []
    for h in range(H):
        v_h = v_scr[:, h * hd:(h + 1) * hd]                                 # (N, hd)
        ctx_list.append(jnp.dot(attn[h].astype(cd), v_h.astype(cd),
                                preferred_element_type=jnp.float32))        # (tq, hd)
    ctx = jnp.concatenate(ctx_list, axis=1)                                 # (tq, C)

    out = jnp.dot(ctx.astype(cd), wproj_ref[...].astype(cd),
                  preferred_element_type=jnp.float32) + bproj_ref[...]
    # proj_drop: identity.
    out_ref[0] = out.astype(out_ref.dtype)


def _pick_tq(N):
    """Query-tile rows: whole sequence when short, 256/128-row tiles otherwise."""
    if N <= 256:
        return N
    for tq in (256, 128):
        if N % tq == 0:
            return tq
    return N   # TODO(synk): pad/ragged handling for N not a multiple of 128.


def _vmem_cap_bytes():
    """Generation-aware scoped-VMEM ceiling: ~78% of physical (≈50 MiB on v7x, ≈100 MiB
    on v5e/v6e); conservative 48 MiB fallback if the query fails."""
    try:
        cap = int(pltpu.get_tpu_info().vmem_capacity_bytes)
        return max(16 * 1024 * 1024, int(0.78 * cap))
    except Exception:
        return 48 * 1024 * 1024


def _vmem_limit_bytes(N, C, H, tq):
    """Scoped-VMEM budget from the actual per-step block footprint (with headroom)."""
    f32, bf16 = 4, 2
    weights = 2 * f32 * (3 * C * C + 3 * C + C * C + C)              # double-buffered dense weights
    io = 2 * (f32 * N * C + bf16 * H * tq * N                        # x + bf16 threshold blocks
              + f32 * tq * C + 2 * f32 * H * tq * N)                 # out + attn + unc blocks
    scratch = 3 * f32 * N * C                                        # q*scale / k^T / v
    live = f32 * (3 * N * C + 6 * H * tq * N + 2 * tq * C)           # qkv + score/softmax/unc temps + ctx
    est = 2 * (weights + io + scratch + live)                        # headroom for Mosaic internals
    return int(min(_vmem_cap_bytes(), max(8 * 1024 * 1024, est)))


def gumbel_threshold(gumbel_noise):
    """Collapse the two Gumbel draws of F.gumbel_softmax([u, 1-u], hard=True) into one
    comparison threshold; stored as bf16 to halve the largest HBM input stream."""
    thr = (gumbel_noise[..., 1] - gumbel_noise[..., 0] + 1.0) * 0.5
    return thr.astype(jnp.bfloat16)


def attention_gumbel(x, params, gumbel_noise, mxu_dtype=jnp.float32):
    """Forward of Attention_gumbel. Returns (x_out, attn_mean, uncertainty).

    mxu_dtype=jnp.bfloat16 enables native-MXU matmuls (f32 accumulation) on v5e/v6e/v7x but
    requires looser numeric tolerances, so the default stays float32."""
    B, N, C = x.shape
    H = params["heads"]
    hd = C // H
    scale = hd ** -0.5
    tq = _pick_tq(N)
    nqt = N // tq

    # Cheap host-side prep (once per call).
    w_du = (params["w_du"] / scale).astype(jnp.float32)   # compensate the scale folded into q
    b_du = params["b_du"].astype(jnp.float32)
    thr = gumbel_threshold(gumbel_noise)                  # (B, H, N, N) bf16

    kernel = functools.partial(_attn_gumbel_kernel, H, tq, mxu_dtype)

    # TODO(synk): on v7x the invariant-weight specs would benefit from
    #             pipeline_mode=pl.Buffered(1) (halves their double-buffered footprint);
    #             kept at the default here for maximum portability.
    in_specs = [
        pl.BlockSpec((1, N, C), lambda b, t: (b, 0, 0)),            # x (index constant over t -> one fetch per batch)
        pl.BlockSpec((C, 3 * C), lambda b, t: (0, 0)),              # w_qkv
        pl.BlockSpec((1, 3 * C), lambda b, t: (0, 0)),              # b_qkv
        pl.BlockSpec((C, C), lambda b, t: (0, 0)),                  # w_proj
        pl.BlockSpec((1, C), lambda b, t: (0, 0)),                  # b_proj
        pl.BlockSpec((H, H), lambda b, t: (0, 0),
                     memory_space=pltpu.MemorySpace.SMEM),          # w_du / scale (scalar FMAs)
        pl.BlockSpec((H,), lambda b, t: (0,),
                     memory_space=pltpu.MemorySpace.SMEM),          # b_du
        pl.BlockSpec((1, H, tq, N), lambda b, t: (b, 0, t, 0)),     # bf16 gumbel threshold
    ]
    out_specs = [
        pl.BlockSpec((1, tq, C), lambda b, t: (b, t, 0)),           # x out
        pl.BlockSpec((1, H, tq, N), lambda b, t: (b, 0, t, 0)),     # attn_mean
        pl.BlockSpec((1, H, tq, N), lambda b, t: (b, 0, t, 0)),     # uncertainty
    ]
    out_shapes = (
        jax.ShapeDtypeStruct((B, N, C), x.dtype),
        jax.ShapeDtypeStruct((B, H, N, N), jnp.float32),
        jax.ShapeDtypeStruct((B, H, N, N), jnp.float32),
    )
    scratch_shapes = [
        pltpu.VMEM((N, C), jnp.float32),    # q * scale (persists across q-tiles)
        pltpu.VMEM((C, N), jnp.float32),    # k^T
        pltpu.VMEM((N, C), jnp.float32),    # v
    ]

    # Advisory cost estimate for XLA scheduling around the custom call.
    flops = B * (2 * N * C * 3 * C          # qkv projection
                 + 4 * N * N * C            # q@k^T + attn@v
                 + 2 * H * H * N * N        # head-mix conv
                 + 2 * N * C * C)           # output projection
    transcendentals = 2 * B * H * N * N     # exp + tanh
    bytes_accessed = (4 * (2 * B * N * C + 2 * B * H * N * N + 4 * C * C + 4 * C + H * H + H)
                      + 2 * B * H * N * N)  # bf16 threshold

    fn = pl.pallas_call(
        kernel,
        grid=(B, nqt),
        in_specs=in_specs,
        out_specs=out_specs,
        out_shape=out_shapes,
        scratch_shapes=scratch_shapes,
        compiler_params=pltpu.CompilerParams(
            dimension_semantics=("parallel", "arbitrary"),
            vmem_limit_bytes=_vmem_limit_bytes(N, C, H, tq)),
        cost_estimate=pl.CostEstimate(flops=flops, transcendentals=transcendentals,
                                      bytes_accessed=bytes_accessed),
    )
    # TODO(synk): for tiny N*C (like the unit-test shapes) a Bt-packed batch block would
    #             amortize the ~0.35 us per-step overhead; irrelevant for realistic N.
    return fn(x, params["w_qkv"], params["b_qkv"], params["w_proj"],
              params["b_proj"], w_du, b_du, thr)


def init_params(key, dim, heads):
    """Deterministic synthetic parameters (shapes from Attention_gumbel.__init__)."""
    ks = jax.random.split(key, 6)
    s = dim ** -0.5
    return dict(
        heads=heads,
        # qkv: Linear(dim, 3*dim) -> stored transposed for x @ W
        w_qkv=jax.random.normal(ks[0], (dim, 3 * dim), jnp.float32) * s,
        b_qkv=jax.random.normal(ks[1], (1, 3 * dim), jnp.float32) * 0.02,
        # proj: Linear(dim, dim)
        w_proj=jax.random.normal(ks[2], (dim, dim), jnp.float32) * s,
        b_proj=jax.random.normal(ks[3], (1, dim), jnp.float32) * 0.02,
        # data_uncertainty: Conv2d(heads, heads, 1) -> (out, in) weight + bias
        w_du=jax.random.normal(ks[4], (heads, heads), jnp.float32) * (heads ** -0.5),
        b_du=jax.random.normal(ks[5], (heads,), jnp.float32) * 0.02,
    )


def reference(x, p, g):
    """Pure-JAX reference mirroring the PyTorch forward (eval mode). The hard-gumbel
    comparison uses the same bf16-quantized threshold as the kernel."""
    B, N, C = x.shape
    H = p["heads"]
    hd = C // H
    qkv = x @ p["w_qkv"] + p["b_qkv"][0]
    qkv = qkv.reshape(B, N, 3, H, hd).transpose(2, 0, 3, 1, 4)
    q, k, v = qkv[0], qkv[1], qkv[2]                           # (B, H, N, hd)
    qk = jnp.einsum("bhnd,bhmd->bhnm", q, k)
    attn_mean = jax.nn.softmax(qk * hd ** -0.5, axis=-1)
    u = jnp.einsum("oi,binm->bonm", p["w_du"], qk) + p["b_du"][None, :, None, None]
    u = jnp.log(jnp.exp(u))                                    # norm_uncertainty's log(exp(.))
    unc = (jnp.tanh(u) + 1.0) / 2.0
    # get_gumbel_mask(hard=True) forward value, expressed via the shared threshold.
    thr = gumbel_threshold(g).astype(jnp.float32)
    mask = (thr > unc).astype(attn_mean.dtype)
    attn = attn_mean * mask
    out = jnp.einsum("bhnm,bhmd->bnhd", attn, v).reshape(B, N, C)
    out = out @ p["w_proj"] + p["b_proj"][0]
    return out, attn_mean, unc


if __name__ == "__main__":
    B, N, C, heads = 2, 8, 32, 4   # dim=32, heads=4, head_dim=8, dropout=0.0
    key = jax.random.PRNGKey(0)
    kx, kp, kg = jax.random.split(key, 3)
    x = jax.random.normal(kx, (B, N, C), jnp.float32)
    params = init_params(kp, C, heads)
    # Deterministic replacement for the Gumbel noise torch samples internally.
    g = jax.random.gumbel(kg, (B, heads, N, N, 2), jnp.float32)

    out, attn_mean, unc = attention_gumbel(x, params, g)
    jax.block_until_ready((out, attn_mean, unc))

    ref_out, ref_attn, ref_unc = reference(x, params, g)
    np.testing.assert_allclose(np.asarray(attn_mean), np.asarray(ref_attn), rtol=1e-4, atol=1e-4)
    np.testing.assert_allclose(np.asarray(unc), np.asarray(ref_unc), rtol=1e-4, atol=1e-4)
    np.testing.assert_allclose(np.asarray(out), np.asarray(ref_out), rtol=1e-4, atol=1e-4)

    print("KERNEL_OK")
</pallas_src>

<mosaic_0001>
module attributes {stable_mosaic.version = 11 : i64} {
  func.func @_attn_gumbel_kernel(%arg0: i32, %arg1: i32, %arg2: memref<1x8x32xf32, #tpu.memory_space<vmem>>, %arg3: memref<32x96xf32, #tpu.memory_space<vmem>>, %arg4: memref<1x96xf32, #tpu.memory_space<vmem>>, %arg5: memref<32x32xf32, #tpu.memory_space<vmem>>, %arg6: memref<1x32xf32, #tpu.memory_space<vmem>>, %arg7: memref<4x4xf32, #tpu.memory_space<smem>>, %arg8: memref<4xf32, #tpu.memory_space<smem>>, %arg9: memref<1x4x8x8xbf16, #tpu.memory_space<vmem>>, %arg10: memref<1x8x32xf32, #tpu.memory_space<vmem>>, %arg11: memref<1x4x8x8xf32, #tpu.memory_space<vmem>>, %arg12: memref<1x4x8x8xf32, #tpu.memory_space<vmem>>, %arg13: memref<8x32xf32, #tpu.memory_space<vmem>>, %arg14: memref<32x8xf32, #tpu.memory_space<vmem>>, %arg15: memref<8x32xf32, #tpu.memory_space<vmem>>) attributes {dimension_semantics = [#tpu.dimension_semantics<parallel>, #tpu.dimension_semantics<arbitrary>], iteration_bounds = array<i64: 2, 1>, scalar_prefetch = 0 : i64, scratch_operands = 3 : i64, tpu.core_type = #tpu.core_type<tc>, window_params = [{transform_indices = @transform_0, window_bounds = array<i64: 1, 8, 32>}, {pipeline_mode = #tpu.pipeline_mode<synchronous>, transform_indices = @transform_1, window_bounds = array<i64: 32, 96>}, {pipeline_mode = #tpu.pipeline_mode<synchronous>, transform_indices = @transform_2, window_bounds = array<i64: 1, 96>}, {pipeline_mode = #tpu.pipeline_mode<synchronous>, transform_indices = @transform_3, window_bounds = array<i64: 32, 32>}, {pipeline_mode = #tpu.pipeline_mode<synchronous>, transform_indices = @transform_4, window_bounds = array<i64: 1, 32>}, {transform_indices = @transform_5, window_bounds = array<i64: 4, 4>}, {transform_indices = @transform_6, window_bounds = array<i64: 4>}, {transform_indices = @transform_7, window_bounds = array<i64: 1, 4, 8, 8>}, {transform_indices = @transform_8, window_bounds = array<i64: 1, 8, 32>}, {transform_indices = @transform_9, window_bounds = array<i64: 1, 4, 8, 8>}, {transform_indices = @transform_10, window_bounds = array<i64: 1, 4, 8, 8>}]} {
    %c0_i32 = arith.constant 0 : i32
    %0 = arith.cmpi eq, %arg1, %c0_i32 : i32
    %1 = arith.extui %0 : i1 to i32
    %c0_i32_0 = arith.constant 0 : i32
    %2 = arith.cmpi ne, %1, %c0_i32_0 : i32
    scf.if %2 {
      %c0_86 = arith.constant 0 : index
      %c0_87 = arith.constant 0 : index
      %c0_88 = arith.constant 0 : index
      %169 = vector.load %arg2[%c0_86, %c0_87, %c0_88] : memref<1x8x32xf32, #tpu.memory_space<vmem>>, vector<1x8x32xf32>
      %170 = vector.shape_cast %169 : vector<1x8x32xf32> to vector<8x32xf32>
      %c0_89 = arith.constant 0 : index
      %c0_90 = arith.constant 0 : index
      %171 = vector.load %arg3[%c0_89, %c0_90] : memref<32x96xf32, #tpu.memory_space<vmem>>, vector<32x96xf32>
      %cst_91 = arith.constant dense<0.000000e+00> : vector<8x96xf32>
      %172 = tpu.matmul %170, %171, %cst_91 {dimension_numbers = #tpu.dot_dimension_numbers<[1], [0], [0], [1], [0, 0, 1, 1], [], []>} : vector<8x32xf32>, vector<32x96xf32>, vector<8x96xf32> -> vector<8x96xf32>
      %c0_92 = arith.constant 0 : index
      %c0_93 = arith.constant 0 : index
      %173 = vector.load %arg4[%c0_92, %c0_93] : memref<1x96xf32, #tpu.memory_space<vmem>>, vector<1x96xf32>
      %174 = vector.broadcast %173 : vector<1x96xf32> to vector<8x96xf32>
      %175 = arith.addf %172, %174 : vector<8x96xf32>
      %176 = vector.extract_strided_slice %175 {offsets = [0, 0], sizes = [8, 32], strides = [1, 1]} : vector<8x96xf32> to vector<8x32xf32>
      %cst_94 = arith.constant 0.353553385 : f32
      %177 = vector.broadcast %cst_94 : f32 to vector<8x32xf32>
      %178 = arith.mulf %176, %177 : vector<8x32xf32>
      %c0_95 = arith.constant 0 : index
      %c0_96 = arith.constant 0 : index
      %179 = vector.load %arg13[%c0_95, %c0_96] : memref<8x32xf32, #tpu.memory_space<vmem>>, vector<8x32xf32>
      tpu.vector_store %arg13[%c0_95, %c0_96], %178 {strides = array<i32>} : memref<8x32xf32, #tpu.memory_space<vmem>>, vector<8x32xf32>,
      %180 = vector.extract_strided_slice %175 {offsets = [0, 32], sizes = [8, 32], strides = [1, 1]} : vector<8x96xf32> to vector<8x32xf32>
      %181 = tpu.transpose %180, [1, 0] : vector<8x32xf32> -> vector<32x8xf32>
      %c0_97 = arith.constant 0 : index
      %c0_98 = arith.constant 0 : index
      %182 = vector.load %arg14[%c0_97, %c0_98] : memref<32x8xf32, #tpu.memory_space<vmem>>, vector<32x8xf32>
      tpu.vector_store %arg14[%c0_97, %c0_98], %181 {strides = array<i32>} : memref<32x8xf32, #tpu.memory_space<vmem>>, vector<32x8xf32>,
      %183 = vector.extract_strided_slice %175 {offsets = [0, 64], sizes = [8, 32], strides = [1, 1]} : vector<8x96xf32> to vector<8x32xf32>
      %c0_99 = arith.constant 0 : index
      %c0_100 = arith.constant 0 : index
      %184 = vector.load %arg15[%c0_99, %c0_100] : memref<8x32xf32, #tpu.memory_space<vmem>>, vector<8x32xf32>
      tpu.vector_store %arg15[%c0_99, %c0_100], %183 {strides = array<i32>} : memref<8x32xf32, #tpu.memory_space<vmem>>, vector<8x32xf32>,
    } else {
    }
    %c8_i32 = arith.constant 8 : i32
    %3 = arith.muli %arg1, %c8_i32 : i32
    %4 = tpu.assume_multiple %3, 8 : i32
    %5 = arith.index_cast %4 : i32 to index
    %c0 = arith.constant 0 : index
    %6 = vector.load %arg13[%5, %c0] : memref<8x32xf32, #tpu.memory_space<vmem>>, vector<8x32xf32>
    %7 = vector.extract_strided_slice %6 {offsets = [0, 0], sizes = [8, 8], strides = [1, 1]} : vector<8x32xf32> to vector<8x8xf32>
    %c0_1 = arith.constant 0 : index
    %c0_2 = arith.constant 0 : index
    %8 = vector.load %arg14[%c0_1, %c0_2] : memref<32x8xf32, #tpu.memory_space<vmem>>, vector<8x8xf32>
    %cst = arith.constant dense<0.000000e+00> : vector<8x8xf32>
    %9 = tpu.matmul %7, %8, %cst {dimension_numbers = #tpu.dot_dimension_numbers<[1], [0], [0], [1], [0, 0, 1, 1], [], []>} : vector<8x8xf32>, vector<8x8xf32>, vector<8x8xf32> -> vector<8x8xf32>
    %10 = vector.extract_strided_slice %6 {offsets = [0, 8], sizes = [8, 8], strides = [1, 1]} : vector<8x32xf32> to vector<8x8xf32>
    %c8 = arith.constant 8 : index
    %c0_3 = arith.constant 0 : index
    %11 = vector.load %arg14[%c8, %c0_3] : memref<32x8xf32, #tpu.memory_space<vmem>>, vector<8x8xf32>
    %cst_4 = arith.constant dense<0.000000e+00> : vector<8x8xf32>
    %12 = tpu.matmul %10, %11, %cst_4 {dimension_numbers = #tpu.dot_dimension_numbers<[1], [0], [0], [1], [0, 0, 1, 1], [], []>} : vector<8x8xf32>, vector<8x8xf32>, vector<8x8xf32> -> vector<8x8xf32>
    %13 = vector.extract_strided_slice %6 {offsets = [0, 16], sizes = [8, 8], strides = [1, 1]} : vector<8x32xf32> to vector<8x8xf32>
    %c16 = arith.constant 16 : index
    %c0_5 = arith.constant 0 : index
    %14 = vector.load %arg14[%c16, %c0_5] : memref<32x8xf32, #tpu.memory_space<vmem>>, vector<8x8xf32>
    %cst_6 = arith.constant dense<0.000000e+00> : vector<8x8xf32>
    %15 = tpu.matmul %13, %14, %cst_6 {dimension_numbers = #tpu.dot_dimension_numbers<[1], [0], [0], [1], [0, 0, 1, 1], [], []>} : vector<8x8xf32>, vector<8x8xf32>, vector<8x8xf32> -> vector<8x8xf32>
    %16 = vector.extract_strided_slice %6 {offsets = [0, 24], sizes = [8, 8], strides = [1, 1]} : vector<8x32xf32> to vector<8x8xf32>
    %c24 = arith.constant 24 : index
    %c0_7 = arith.constant 0 : index
    %17 = vector.load %arg14[%c24, %c0_7] : memref<32x8xf32, #tpu.memory_space<vmem>>, vector<8x8xf32>
    %cst_8 = arith.constant dense<0.000000e+00> : vector<8x8xf32>
    %18 = tpu.matmul %16, %17, %cst_8 {dimension_numbers = #tpu.dot_dimension_numbers<[1], [0], [0], [1], [0, 0, 1, 1], [], []>} : vector<8x8xf32>, vector<8x8xf32>, vector<8x8xf32> -> vector<8x8xf32>
    %19 = vector.shape_cast %9 : vector<8x8xf32> to vector<1x8x8xf32>
    %20 = vector.shape_cast %12 : vector<8x8xf32> to vector<1x8x8xf32>
    %21 = vector.shape_cast %15 : vector<8x8xf32> to vector<1x8x8xf32>
    %22 = vector.shape_cast %18 : vector<8x8xf32> to vector<1x8x8xf32>
    %23 = tpu.concatenate %19, %20, %21, %22 in 0 : vector<1x8x8xf32>, vector<1x8x8xf32>, vector<1x8x8xf32>, vector<1x8x8xf32> -> vector<4x8x8xf32>
    %cst_9 = arith.constant dense<0xFF800000> : vector<4x8xf32>
    %24 = vector.multi_reduction <maximumf>, %23, %cst_9 [2] : vector<4x8x8xf32> to vector<4x8xf32>
    %25 = vector.shape_cast %24 : vector<4x8xf32> to vector<4x8x1xf32>
    %26 = vector.broadcast %25 : vector<4x8x1xf32> to vector<4x8x8xf32>
    %27 = arith.subf %23, %26 : vector<4x8x8xf32>
    %28 = math.exp %27 : vector<4x8x8xf32>
    %cst_10 = arith.constant dense<0.000000e+00> : vector<4x8xf32>
    %29 = vector.multi_reduction <add>, %28, %cst_10 [2] : vector<4x8x8xf32> to vector<4x8xf32>
    %30 = vector.shape_cast %29 : vector<4x8xf32> to vector<4x8x1xf32>
    %cst_11 = arith.constant 1.000000e+00 : f32
    %31 = vector.broadcast %cst_11 : f32 to vector<4x8x1xf32>
    %32 = arith.divf %31, %30 : vector<4x8x1xf32>
    %33 = vector.broadcast %32 : vector<4x8x1xf32> to vector<4x8x8xf32>
    %34 = arith.mulf %28, %33 : vector<4x8x8xf32>
    %c0_12 = arith.constant 0 : index
    %c0_13 = arith.constant 0 : index
    %c0_14 = arith.constant 0 : index
    %c0_15 = arith.constant 0 : index
    %35 = vector.load %arg11[%c0_12, %c0_13, %c0_14, %c0_15] : memref<1x4x8x8xf32, #tpu.memory_space<vmem>>, vector<1x4x8x8xf32>
    %36 = vector.shape_cast %35 : vector<1x4x8x8xf32> to vector<4x8x8xf32>
    %37 = vector.shape_cast %34 : vector<4x8x8xf32> to vector<1x4x8x8xf32>
    tpu.vector_store %arg11[%c0_12, %c0_13, %c0_14, %c0_15], %37 {strides = array<i32>} : memref<1x4x8x8xf32, #tpu.memory_space<vmem>>, vector<1x4x8x8xf32>,
    %c0_16 = arith.constant 0 : index
    %c0_17 = arith.constant 0 : index
    %38 = memref.load %arg7[%c0_16, %c0_17] : memref<4x4xf32, #tpu.memory_space<smem>>
    %39 = vector.broadcast %38 : f32 to vector<8x8xf32>
    %40 = arith.mulf %9, %39 : vector<8x8xf32>
    %c0_18 = arith.constant 0 : index
    %c1 = arith.constant 1 : index
    %41 = memref.load %arg7[%c0_18, %c1] : memref<4x4xf32, #tpu.memory_space<smem>>
    %42 = vector.broadcast %41 : f32 to vector<8x8xf32>
    %43 = arith.mulf %12, %42 : vector<8x8xf32>
    %44 = arith.addf %40, %43 : vector<8x8xf32>
    %c0_19 = arith.constant 0 : index
    %c2 = arith.constant 2 : index
    %45 = memref.load %arg7[%c0_19, %c2] : memref<4x4xf32, #tpu.memory_space<smem>>
    %46 = vector.broadcast %45 : f32 to vector<8x8xf32>
    %47 = arith.mulf %15, %46 : vector<8x8xf32>
    %48 = arith.addf %44, %47 : vector<8x8xf32>
    %c0_20 = arith.constant 0 : index
    %c3 = arith.constant 3 : index
    %49 = memref.load %arg7[%c0_20, %c3] : memref<4x4xf32, #tpu.memory_space<smem>>
    %50 = vector.broadcast %49 : f32 to vector<8x8xf32>
    %51 = arith.mulf %18, %50 : vector<8x8xf32>
    %52 = arith.addf %48, %51 : vector<8x8xf32>
    %c0_21 = arith.constant 0 : index
    %53 = memref.load %arg8[%c0_21] : memref<4xf32, #tpu.memory_space<smem>>
    %54 = vector.broadcast %53 : f32 to vector<8x8xf32>
    %55 = arith.addf %52, %54 : vector<8x8xf32>
    %56 = math.tanh %55 : vector<8x8xf32>
    %cst_22 = arith.constant 1.000000e+00 : f32
    %57 = vector.broadcast %cst_22 : f32 to vector<8x8xf32>
    %58 = arith.addf %56, %57 : vector<8x8xf32>
    %cst_23 = arith.constant 5.000000e-01 : f32
    %59 = vector.broadcast %cst_23 : f32 to vector<8x8xf32>
    %60 = arith.mulf %58, %59 : vector<8x8xf32>
    %c1_24 = arith.constant 1 : index
    %c0_25 = arith.constant 0 : index
    %61 = memref.load %arg7[%c1_24, %c0_25] : memref<4x4xf32, #tpu.memory_space<smem>>
    %62 = vector.broadcast %61 : f32 to vector<8x8xf32>
    %63 = arith.mulf %9, %62 : vector<8x8xf32>
    %c1_26 = arith.constant 1 : index
    %c1_27 = arith.constant 1 : index
    %64 = memref.load %arg7[%c1_26, %c1_27] : memref<4x4xf32, #tpu.memory_space<smem>>
    %65 = vector.broadcast %64 : f32 to vector<8x8xf32>
    %66 = arith.mulf %12, %65 : vector<8x8xf32>
    %67 = arith.addf %63, %66 : vector<8x8xf32>
    %c1_28 = arith.constant 1 : index
    %c2_29 = arith.constant 2 : index
    %68 = memref.load %arg7[%c1_28, %c2_29] : memref<4x4xf32, #tpu.memory_space<smem>>
    %69 = vector.broadcast %68 : f32 to vector<8x8xf32>
    %70 = arith.mulf %15, %69 : vector<8x8xf32>
    %71 = arith.addf %67, %70 : vector<8x8xf32>
    %c1_30 = arith.constant 1 : index
    %c3_31 = arith.constant 3 : index
    %72 = memref.load %arg7[%c1_30, %c3_31] : memref<4x4xf32, #tpu.memory_space<smem>>
    %73 = vector.broadcast %72 : f32 to vector<8x8xf32>
    %74 = arith.mulf %18, %73 : vector<8x8xf32>
    %75 = arith.addf %71, %74 : vector<8x8xf32>
    %c1_32 = arith.constant 1 : index
    %76 = memref.load %arg8[%c1_32] : memref<4xf32, #tpu.memory_space<smem>>
    %77 = vector.broadcast %76 : f32 to vector<8x8xf32>
    %78 = arith.addf %75, %77 : vector<8x8xf32>
    %79 = math.tanh %78 : vector<8x8xf32>
    %cst_33 = arith.constant 1.000000e+00 : f32
    %80 = vector.broadcast %cst_33 : f32 to vector<8x8xf32>
    %81 = arith.addf %79, %80 : vector<8x8xf32>
    %cst_34 = arith.constant 5.000000e-01 : f32
    %82 = vector.broadcast %cst_34 : f32 to vector<8x8xf32>
    %83 = arith.mulf %81, %82 : vector<8x8xf32>
    %c2_35 = arith.constant 2 : index
    %c0_36 = arith.constant 0 : index
    %84 = memref.load %arg7[%c2_35, %c0_36] : memref<4x4xf32, #tpu.memory_space<smem>>
    %85 = vector.broadcast %84 : f32 to vector<8x8xf32>
    %86 = arith.mulf %9, %85 : vector<8x8xf32>
    %c2_37 = arith.constant 2 : index
    %c1_38 = arith.constant 1 : index
    %87 = memref.load %arg7[%c2_37, %c1_38] : memref<4x4xf32, #tpu.memory_space<smem>>
    %88 = vector.broadcast %87 : f32 to vector<8x8xf32>
    %89 = arith.mulf %12, %88 : vector<8x8xf32>
    %90 = arith.addf %86, %89 : vector<8x8xf32>
    %c2_39 = arith.constant 2 : index
    %c2_40 = arith.constant 2 : index
    %91 = memref.load %arg7[%c2_39, %c2_40] : memref<4x4xf32, #tpu.memory_space<smem>>
    %92 = vector.broadcast %91 : f32 to vector<8x8xf32>
    %93 = arith.mulf %15, %92 : vector<8x8xf32>
    %94 = arith.addf %90, %93 : vector<8x8xf32>
    %c2_41 = arith.constant 2 : index
    %c3_42 = arith.constant 3 : index
    %95 = memref.load %arg7[%c2_41, %c3_42] : memref<4x4xf32, #tpu.memory_space<smem>>
    %96 = vector.broadcast %95 : f32 to vector<8x8xf32>
    %97 = arith.mulf %18, %96 : vector<8x8xf32>
    %98 = arith.addf %94, %97 : vector<8x8xf32>
    %c2_43 = arith.constant 2 : index
    %99 = memref.load %arg8[%c2_43] : memref<4xf32, #tpu.memory_space<smem>>
    %100 = vector.broadcast %99 : f32 to vector<8x8xf32>
    %101 = arith.addf %98, %100 : vector<8x8xf32>
    %102 = math.tanh %101 : vector<8x8xf32>
    %cst_44 = arith.constant 1.000000e+00 : f32
    %103 = vector.broadcast %cst_44 : f32 to vector<8x8xf32>
    %104 = arith.addf %102, %103 : vector<8x8xf32>
    %cst_45 = arith.constant 5.000000e-01 : f32
    %105 = vector.broadcast %cst_45 : f32 to vector<8x8xf32>
    %106 = arith.mulf %104, %105 : vector<8x8xf32>
    %c3_46 = arith.constant 3 : index
    %c0_47 = arith.constant 0 : index
    %107 = memref.load %arg7[%c3_46, %c0_47] : memref<4x4xf32, #tpu.memory_space<smem>>
    %108 = vector.broadcast %107 : f32 to vector<8x8xf32>
    %109 = arith.mulf %9, %108 : vector<8x8xf32>
    %c3_48 = arith.constant 3 : index
    %c1_49 = arith.constant 1 : index
    %110 = memref.load %arg7[%c3_48, %c1_49] : memref<4x4xf32, #tpu.memory_space<smem>>
    %111 = vector.broadcast %110 : f32 to vector<8x8xf32>
    %112 = arith.mulf %12, %111 : vector<8x8xf32>
    %113 = arith.addf %109, %112 : vector<8x8xf32>
    %c3_50 = arith.constant 3 : index
    %c2_51 = arith.constant 2 : index
    %114 = memref.load %arg7[%c3_50, %c2_51] : memref<4x4xf32, #tpu.memory_space<smem>>
    %115 = vector.broadcast %114 : f32 to vector<8x8xf32>
    %116 = arith.mulf %15, %115 : vector<8x8xf32>
    %117 = arith.addf %113, %116 : vector<8x8xf32>
    %c3_52 = arith.constant 3 : index
    %c3_53 = arith.constant 3 : index
    %118 = memref.load %arg7[%c3_52, %c3_53] : memref<4x4xf32, #tpu.memory_space<smem>>
    %119 = vector.broadcast %118 : f32 to vector<8x8xf32>
    %120 = arith.mulf %18, %119 : vector<8x8xf32>
    %121 = arith.addf %117, %120 : vector<8x8xf32>
    %c3_54 = arith.constant 3 : index
    %122 = memref.load %arg8[%c3_54] : memref<4xf32, #tpu.memory_space<smem>>
    %123 = vector.broadcast %122 : f32 to vector<8x8xf32>
    %124 = arith.addf %121, %123 : vector<8x8xf32>
    %125 = math.tanh %124 : vector<8x8xf32>
    %cst_55 = arith.constant 1.000000e+00 : f32
    %126 = vector.broadcast %cst_55 : f32 to vector<8x8xf32>
    %127 = arith.addf %125, %126 : vector<8x8xf32>
    %cst_56 = arith.constant 5.000000e-01 : f32
    %128 = vector.broadcast %cst_56 : f32 to vector<8x8xf32>
    %129 = arith.mulf %127, %128 : vector<8x8xf32>
    %130 = vector.shape_cast %60 : vector<8x8xf32> to vector<1x8x8xf32>
    %131 = vector.shape_cast %83 : vector<8x8xf32> to vector<1x8x8xf32>
    %132 = vector.shape_cast %106 : vector<8x8xf32> to vector<1x8x8xf32>
    %133 = vector.shape_cast %129 : vector<8x8xf32> to vector<1x8x8xf32>
    %134 = tpu.concatenate %130, %131, %132, %133 in 0 : vector<1x8x8xf32>, vector<1x8x8xf32>, vector<1x8x8xf32>, vector<1x8x8xf32> -> vector<4x8x8xf32>
    %c0_57 = arith.constant 0 : index
    %c0_58 = arith.constant 0 : index
    %c0_59 = arith.constant 0 : index
    %c0_60 = arith.constant 0 : index
    %135 = vector.load %arg12[%c0_57, %c0_58, %c0_59, %c0_60] : memref<1x4x8x8xf32, #tpu.memory_space<vmem>>, vector<1x4x8x8xf32>
    %136 = vector.shape_cast %135 : vector<1x4x8x8xf32> to vector<4x8x8xf32>
    %137 = vector.shape_cast %134 : vector<4x8x8xf32> to vector<1x4x8x8xf32>
    tpu.vector_store %arg12[%c0_57, %c0_58, %c0_59, %c0_60], %137 {strides = array<i32>} : memref<1x4x8x8xf32, #tpu.memory_space<vmem>>, vector<1x4x8x8xf32>,
    %c0_61 = arith.constant 0 : index
    %c0_62 = arith.constant 0 : index
    %c0_63 = arith.constant 0 : index
    %c0_64 = arith.constant 0 : index
    %138 = vector.load %arg9[%c0_61, %c0_62, %c0_63, %c0_64] : memref<1x4x8x8xbf16, #tpu.memory_space<vmem>>, vector<1x4x8x8xbf16>
    %139 = vector.shape_cast %138 : vector<1x4x8x8xbf16> to vector<4x8x8xbf16>
    %140 = arith.extf %139 : vector<4x8x8xbf16> to vector<4x8x8xf32>
    %141 = arith.cmpf ogt, %140, %134 : vector<4x8x8xf32>
    %cst_65 = arith.constant 0.000000e+00 : f32
    %142 = vector.broadcast %cst_65 : f32 to vector<4x8x8xf32>
    %143 = arith.select %141, %34, %142 : vector<4x8x8xi1>, vector<4x8x8xf32>
    %c0_66 = arith.constant 0 : index
    %c0_67 = arith.constant 0 : index
    %144 = vector.load %arg15[%c0_66, %c0_67] : memref<8x32xf32, #tpu.memory_space<vmem>>, vector<8x8xf32>
    %145 = vector.extract_strided_slice %143 {offsets = [0, 0, 0], sizes = [1, 8, 8], strides = [1, 1, 1]} : vector<4x8x8xf32> to vector<1x8x8xf32>
    %146 = vector.shape_cast %145 : vector<1x8x8xf32> to vector<8x8xf32>
    %cst_68 = arith.constant dense<0.000000e+00> : vector<8x8xf32>
    %147 = tpu.matmul %146, %144, %cst_68 {dimension_numbers = #tpu.dot_dimension_numbers<[1], [0], [0], [1], [0, 0, 1, 1], [], []>} : vector<8x8xf32>, vector<8x8xf32>, vector<8x8xf32> -> vector<8x8xf32>
    %c0_69 = arith.constant 0 : index
    %c8_70 = arith.constant 8 : index
    %148 = vector.load %arg15[%c0_69, %c8_70] : memref<8x32xf32, #tpu.memory_space<vmem>>, vector<8x8xf32>
    %149 = vector.extract_strided_slice %143 {offsets = [1, 0, 0], sizes = [1, 8, 8], strides = [1, 1, 1]} : vector<4x8x8xf32> to vector<1x8x8xf32>
    %150 = vector.shape_cast %149 : vector<1x8x8xf32> to vector<8x8xf32>
    %cst_71 = arith.constant dense<0.000000e+00> : vector<8x8xf32>
    %151 = tpu.matmul %150, %148, %cst_71 {dimension_numbers = #tpu.dot_dimension_numbers<[1], [0], [0], [1], [0, 0, 1, 1], [], []>} : vector<8x8xf32>, vector<8x8xf32>, vector<8x8xf32> -> vector<8x8xf32>
    %c0_72 = arith.constant 0 : index
    %c16_73 = arith.constant 16 : index
    %152 = vector.load %arg15[%c0_72, %c16_73] : memref<8x32xf32, #tpu.memory_space<vmem>>, vector<8x8xf32>
    %153 = vector.extract_strided_slice %143 {offsets = [2, 0, 0], sizes = [1, 8, 8], strides = [1, 1, 1]} : vector<4x8x8xf32> to vector<1x8x8xf32>
    %154 = vector.shape_cast %153 : vector<1x8x8xf32> to vector<8x8xf32>
    %cst_74 = arith.constant dense<0.000000e+00> : vector<8x8xf32>
    %155 = tpu.matmul %154, %152, %cst_74 {dimension_numbers = #tpu.dot_dimension_numbers<[1], [0], [0], [1], [0, 0, 1, 1], [], []>} : vector<8x8xf32>, vector<8x8xf32>, vector<8x8xf32> -> vector<8x8xf32>
    %c0_75 = arith.constant 0 : index
    %c24_76 = arith.constant 24 : index
    %156 = vector.load %arg15[%c0_75, %c24_76] : memref<8x32xf32, #tpu.memory_space<vmem>>, vector<8x8xf32>
    %157 = vector.extract_strided_slice %143 {offsets = [3, 0, 0], sizes = [1, 8, 8], strides = [1, 1, 1]} : vector<4x8x8xf32> to vector<1x8x8xf32>
    %158 = vector.shape_cast %157 : vector<1x8x8xf32> to vector<8x8xf32>
    %cst_77 = arith.constant dense<0.000000e+00> : vector<8x8xf32>
    %159 = tpu.matmul %158, %156, %cst_77 {dimension_numbers = #tpu.dot_dimension_numbers<[1], [0], [0], [1], [0, 0, 1, 1], [], []>} : vector<8x8xf32>, vector<8x8xf32>, vector<8x8xf32> -> vector<8x8xf32>
    %160 = tpu.concatenate %147, %151, %155, %159 in 1 : vector<8x8xf32>, vector<8x8xf32>, vector<8x8xf32>, vector<8x8xf32> -> vector<8x32xf32>
    %c0_78 = arith.constant 0 : index
    %c0_79 = arith.constant 0 : index
    %161 = vector.load %arg5[%c0_78, %c0_79] : memref<32x32xf32, #tpu.memory_space<vmem>>, vector<32x32xf32>
    %cst_80 = arith.constant dense<0.000000e+00> : vector<8x32xf32>
    %162 = tpu.matmul %160, %161, %cst_80 {dimension_numbers = #tpu.dot_dimension_numbers<[1], [0], [0], [1], [0, 0, 1, 1], [], []>} : vector<8x32xf32>, vector<32x32xf32>, vector<8x32xf32> -> vector<8x32xf32>
    %c0_81 = arith.constant 0 : index
    %c0_82 = arith.constant 0 : index
    %163 = vector.load %arg6[%c0_81, %c0_82] : memref<1x32xf32, #tpu.memory_space<vmem>>, vector<1x32xf32>
    %164 = vector.broadcast %163 : vector<1x32xf32> to vector<8x32xf32>
    %165 = arith.addf %162, %164 : vector<8x32xf32>
    %c0_83 = arith.constant 0 : index
    %c0_84 = arith.constant 0 : index
    %c0_85 = arith.constant 0 : index
    %166 = vector.load %arg10[%c0_83, %c0_84, %c0_85] : memref<1x8x32xf32, #tpu.memory_space<vmem>>, vector<1x8x32xf32>
    %167 = vector.shape_cast %166 : vector<1x8x32xf32> to vector<8x32xf32>
    %168 = vector.shape_cast %165 : vector<8x32xf32> to vector<1x8x32xf32>
    tpu.vector_store %arg10[%c0_83, %c0_84, %c0_85], %168 {strides = array<i32>} : memref<1x8x32xf32, #tpu.memory_space<vmem>>, vector<1x8x32xf32>,
    return
  }
  func.func @transform_0(%arg0: i32, %arg1: i32) -> (i32, i32, i32) {
    %c0_i32 = arith.constant 0 : i32
    %c0_i32_0 = arith.constant 0 : i32
    %c0_i32_1 = arith.constant 0 : i32
    return %arg0, %c0_i32, %c0_i32_0 : i32, i32, i32
  }
  func.func @transform_1(%arg0: i32, %arg1: i32) -> (i32, i32) {
    %c0_i32 = arith.constant 0 : i32
    %c0_i32_0 = arith.constant 0 : i32
    %c0_i32_1 = arith.constant 0 : i32
    return %c0_i32, %c0_i32_0 : i32, i32
  }
  func.func @transform_2(%arg0: i32, %arg1: i32) -> (i32, i32) {
    %c0_i32 = arith.constant 0 : i32
    %c0_i32_0 = arith.constant 0 : i32
    %c0_i32_1 = arith.constant 0 : i32
    return %c0_i32, %c0_i32_0 : i32, i32
  }
  func.func @transform_3(%arg0: i32, %arg1: i32) -> (i32, i32) {
    %c0_i32 = arith.constant 0 : i32
    %c0_i32_0 = arith.constant 0 : i32
    %c0_i32_1 = arith.constant 0 : i32
    return %c0_i32, %c0_i32_0 : i32, i32
  }
  func.func @transform_4(%arg0: i32, %arg1: i32) -> (i32, i32) {
    %c0_i32 = arith.constant 0 : i32
    %c0_i32_0 = arith.constant 0 : i32
    %c0_i32_1 = arith.constant 0 : i32
    return %c0_i32, %c0_i32_0 : i32, i32
  }
  func.func @transform_5(%arg0: i32, %arg1: i32) -> (i32, i32) {
    %c0_i32 = arith.constant 0 : i32
    %c0_i32_0 = arith.constant 0 : i32
    %c0_i32_1 = arith.constant 0 : i32
    return %c0_i32, %c0_i32_0 : i32, i32
  }
  func.func @transform_6(%arg0: i32, %arg1: i32) -> i32 {
    %c0_i32 = arith.constant 0 : i32
    %c0_i32_0 = arith.constant 0 : i32
    return %c0_i32 : i32
  }
  func.func @transform_7(%arg0: i32, %arg1: i32) -> (i32, i32, i32, i32) {
    %c0_i32 = arith.constant 0 : i32
    %c0_i32_0 = arith.constant 0 : i32
    %c0_i32_1 = arith.constant 0 : i32
    return %arg0, %c0_i32, %arg1, %c0_i32_0 : i32, i32, i32, i32
  }
  func.func @transform_8(%arg0: i32, %arg1: i32) -> (i32, i32, i32) {
    %c0_i32 = arith.constant 0 : i32
    %c0_i32_0 = arith.constant 0 : i32
    return %arg0, %arg1, %c0_i32 : i32, i32, i32
  }
  func.func @transform_9(%arg0: i32, %arg1: i32) -> (i32, i32, i32, i32) {
    %c0_i32 = arith.constant 0 : i32
    %c0_i32_0 = arith.constant 0 : i32
    %c0_i32_1 = arith.constant 0 : i32
    return %arg0, %c0_i32, %arg1, %c0_i32_0 : i32, i32, i32, i32
  }
  func.func @transform_10(%arg0: i32, %arg1: i32) -> (i32, i32, i32, i32) {
    %c0_i32 = arith.constant 0 : i32
    %c0_i32_0 = arith.constant 0 : i32
    %c0_i32_1 = arith.constant 0 : i32
    return %arg0, %c0_i32, %arg1, %c0_i32_0 : i32, i32, i32, i32
  }
}

</mosaic_0001>

<llo_original>
// kernel: tpu_custom_call.1
$region0: #{tpu_custom_call.1}
  #allocation0 [shape = 'u32[]', space=smem, size = 0x4, offset = 0x4, fixed_abs, tag = 'smem constant byte address 0x4 - core index']
  #allocation1 [shape = 'u32[144,128]{1,0:T(1,128)}', space=vmem, size = 0x12000, scoped, tag = 'internal scratch']
  #allocation2 [shape = 'f32[8,32]{1,0:T(8,128)}', space=vmem, size = 0x1000, scoped, tag = 'scratch operand']
  #allocation3 [shape = 'f32[32,8]{1,0:T(8,128)}', space=vmem, size = 0x4000, scoped, tag = 'scratch operand']
  #allocation4 [shape = 'f32[8,32]{1,0:T(8,128)}', space=vmem, size = 0x1000, scoped, tag = 'scratch operand']
  %s0 = inlined_call_operand.hbm [shape: f32[2,8,32], index: 0, kind: input, shape index: {}]
  %s1 = inlined_call_operand.hbm [shape: f32[32,96], index: 1, kind: input, shape index: {}]
  %s2 = inlined_call_operand.vmem [shape: f32[1,96], index: 2, kind: input, shape index: {}]
  %s3 = inlined_call_operand.hbm [shape: f32[32,32], index: 3, kind: input, shape index: {}]
  %s4 = inlined_call_operand.vmem [shape: f32[1,32], index: 4, kind: input, shape index: {}]
  %s5 = inlined_call_operand.vmem [shape: f32[4,4], index: 5, kind: input, shape index: {}]
  %s6 = inlined_call_operand.vmem [shape: f32[4], index: 6, kind: input, shape index: {}]
  %s7 = inlined_call_operand.hbm [shape: bf16[2,4,8,8], index: 7, kind: input, shape index: {}]
  %s8 = inlined_call_operand.hbm [shape: f32[2,8,32], index: 8, kind: output, shape index: {0}]
  %s9 = inlined_call_operand.hbm [shape: f32[2,4,8,8], index: 9, kind: output, shape index: {1}]
  %s10 = inlined_call_operand.hbm [shape: f32[2,4,8,8], index: 10, kind: output, shape index: {2}]
  %11 = xla_tuple %s8, %s9, %s10
  %s12 = sld [smem:[#allocation0]]
  $region109: #{tpu_custom_call.1} parent=0
    _
  %s14 = ssub.s32 1, %s12
  %s15 = scalar_select 0, %s14, %s12
  $region1: #{tpu_custom_call.1} parent=0
    #allocation5 [shape = 'u8[8192]{0}', space=vmem, size = 0x2000, scoped, tag = 'input window, operand 0']
    #allocation6 [shape = 's32[2]{0}', space=sflag, size = 0x8, scoped, tag = 'scoped memory for tpu_custom_call.1']
    #allocation7 [shape = 's32[2]{0}', space=sflag, size = 0x8, scoped, tag = 'scoped memory for tpu_custom_call.1']
    #allocation8 [shape = 's32[2]{0}', space=sflag, size = 0x8, scoped, tag = 'scoped memory for tpu_custom_call.1']
    #allocation9 [shape = 'u8[16384]{0}', space=vmem, size = 0x4000, scoped, tag = 'input window, operand 1, single buffered']
    #allocation10 [shape = 's32[1]{0}', space=sflag, size = 0x4, scoped, tag = 'scoped memory for tpu_custom_call.1']
    #allocation11 [shape = 'u8[16384]{0}', space=vmem, size = 0x4000, scoped, tag = 'input window, operand 3, single buffered']
    #allocation12 [shape = 'u8[2048]{0}', space=smem, size = 0x800, scoped, tag = 'input window, operand 5, single buffered']
    #allocation13 [shape = 'u8[512]{0}', space=smem, size = 0x200, scoped, tag = 'input window, operand 6, single buffered']
    #allocation14 [shape = 's32[1]{0}', space=sflag, size = 0x4, scoped, tag = 'scoped memory for tpu_custom_call.1']
    #allocation15 [shape = 'u8[16384]{0}', space=vmem, size = 0x4000, scoped, tag = 'input window, operand 7']
    #allocation16 [shape = 's32[2]{0}', space=sflag, size = 0x8, scoped, tag = 'scoped memory for tpu_custom_call.1']
    #allocation17 [shape = 'u8[8192]{0}', space=vmem, size = 0x2000, scoped, tag = 'output window, operand 0']
    #allocation18 [shape = 'u8[32768]{0}', space=vmem, size = 0x8000, scoped, tag = 'output window, operand 1']
    #allocation19 [shape = 's32[2]{0}', space=sflag, size = 0x8, scoped, tag = 'scoped memory for tpu_custom_call.1']
    #allocation20 [shape = 'u8[32768]{0}', space=vmem, size = 0x8000, scoped, tag = 'output window, operand 2']
    %16 = vsyncpa [#allocation6], 0
    %s17 = scalar_lea.sflag [#allocation6], 1
    %18 = vsyncpa %s17, 0
    %19 = vsyncpa [#allocation10], 0
    %20 = vsyncpa [#allocation8], 0
    %21 = vsyncpa [#allocation14], 0
    %22 = vsyncpa [#allocation16], 0
    %s23 = scalar_lea.sflag [#allocation16], 1
    %24 = vsyncpa %s23, 0
    %25 = vsyncpa [#allocation7], 0
    %s26 = scalar_lea.sflag [#allocation7], 1
    %27 = vsyncpa %s26, 0
    %28 = vsyncpa [#allocation19], 0
    %s29 = scalar_lea.sflag [#allocation19], 1
    %30 = vsyncpa %s29, 0
    loop: start=0, step=1, limit=4
    $region2: #{tpu_custom_call.1} parent=1 // loop_pre_header
      _
    $region3: #{tpu_custom_call.1} parent=1 // loop_header
      %s32 = sphi 0, %s36
      %p33 = scmp.ge.s32.totalorder %s32, 4
      %s39 = sphi 0, %s51
      %s40 = sphi 0, %s47
      %s41 = sphi 0, %s39
      %s42 = sphi 0, %s40
      %s43 = sphi 0, %s41
      %s44 = sphi 0, %s42
      %s54 = sphi 0, %s56
      %s57 = sphi 0, %s54
      %s58 = sphi 0, %s57
      %s74 = sphi 0, %s58
      %s78 = sphi 0, %s78
      %s80 = sphi 0, %s78
      %s81 = sphi 0, %s80
      %s95 = sphi 0, %s81
      %s99 = sphi 0, %s99
      %s101 = sphi 0, %s99
      %s102 = sphi 0, %s101
      %s116 = sphi 0, %s102
      %s120 = sphi 0, %s120
      %s122 = sphi 0, %s120
      %s123 = sphi 0, %s122
      %s137 = sphi 0, %s123
      %s141 = sphi 0, %s141
      %s143 = sphi 0, %s141
      %s144 = sphi 0, %s143
      %s158 = sphi 0, %s144
      %s162 = sphi 0, %s162
      %s164 = sphi 0, %s162
      %s165 = sphi 0, %s164
      %s179 = sphi 0, %s165
      %s183 = sphi 0, %s183
      %s185 = sphi 0, %s183
      %s186 = sphi 0, %s185
      %s200 = sphi 0, %s186
      %s208 = sphi 0, %s210
      %s211 = sphi 0, %s208
      %s212 = sphi 0, %s211
      %s228 = sphi 0, %s212
      %s236 = sphi 0, %s238
      %s239 = sphi 0, %s236
      %s240 = sphi 0, %s239
      %s256 = sphi 0, %s240
      %s264 = sphi 0, %s266
      %s267 = sphi 0, %s264
      %s268 = sphi 0, %s267
      %s284 = sphi 0, %s268
      %s292 = sphi 0, %s294
      %s295 = sphi 0, %s292
      %s296 = sphi 0, %s295
      %s312 = sphi 0, %s296
    $region4: #{tpu_custom_call.1} parent=1 // loop_header_branch
      %35 = sbr.rel (%p33) target = $region8
    $region5: #{tpu_custom_call.1} parent=1 // loop_body
      %s37 = ssub.s32 %s32, 1
      %s38 = ssub.s32 %s32, 2
      %s45 = sadd.s32 1, %s40
      %p46 = scmp.ge.s32.totalorder %s45, 1
      %s47 = scalar_select %p46, 0, %s45
      %s48 = sadd.s32 1, %s39
      %s49 = scalar_select %p46, %s48, %s39
      %p50 = scmp.ge.s32.totalorder %s49, 2
      %s51 = scalar_select %p50, 0, %s49
      %s52 = ssub.s32 %s39, %s51
      %p53 = scmp.eq.s32.totalorder %s52, 0
      %s55 = sadd.s32 %s54, 1
      %s56 = scalar_select %p53, %s54, %s55
      %p59 = pneg %p53
      %p60 = scmp.eq.s32.totalorder %s32, 1
      %p61 = por %p59, %p60
      %p62 = scmp.ne.s32.totalorder %s54, %s57
      %p63 = scmp.eq.s32.totalorder %s32, 0
      %p64 = por %p62, %p63
      %p65 = scmp.ne.s32.totalorder %s54, %s57
      %p66 = scmp.eq.s32.totalorder %s37, 1
      %p67 = por %p65, %p66
      %p68 = scmp.ne.s32.totalorder %s57, %s58
      %p69 = scmp.eq.s32.totalorder %s37, 0
      %p70 = por %p68, %p69
      %p71 = scmp.ne.s32.totalorder %s57, %s58
      %p72 = scmp.eq.s32.totalorder %s38, 1
      %p73 = por %p71, %p72
      %p75 = scmp.ne.s32.totalorder %s58, %s74
      %p76 = scmp.eq.s32.totalorder %s38, 0
      %p77 = por %p75, %p76
      %s79 = sadd.s32 %s78, 1
      %p82 = scmp.eq.s32.totalorder %s32, 1
      %p83 = scmp.ne.s32.totalorder %s78, %s80
      %p84 = scmp.eq.s32.totalorder %s32, 0
      %p85 = por %p83, %p84
      %p86 = scmp.ne.s32.totalorder %s78, %s80
      %p87 = scmp.eq.s32.totalorder %s37, 1
      %p88 = por %p86, %p87
      %p89 = scmp.ne.s32.totalorder %s80, %s81
      %p90 = scmp.eq.s32.totalorder %s37, 0
      %p91 = por %p89, %p90
      %p92 = scmp.ne.s32.totalorder %s80, %s81
      %p93 = scmp.eq.s32.totalorder %s38, 1
      %p94 = por %p92, %p93
      %p96 = scmp.ne.s32.totalorder %s81, %s95
      %p97 = scmp.eq.s32.totalorder %s38, 0
      %p98 = por %p96, %p97
      %s100 = sadd.s32 %s99, 1
      %p103 = scmp.eq.s32.totalorder %s32, 1
      %p104 = scmp.ne.s32.totalorder %s99, %s101
      %p105 = scmp.eq.s32.totalorder %s32, 0
      %p106 = por %p104, %p105
      %p107 = scmp.ne.s32.totalorder %s99, %s101
      %p108 = scmp.eq.s32.totalorder %s37, 1
      %p109 = por %p107, %p108
      %p110 = scmp.ne.s32.totalorder %s101, %s102
      %p111 = scmp.eq.s32.totalorder %s37, 0
      %p112 = por %p110, %p111
      %p113 = scmp.ne.s32.totalorder %s101, %s102
      %p114 = scmp.eq.s32.totalorder %s38, 1
      %p115 = por %p113, %p114
      %p117 = scmp.ne.s32.totalorder %s102, %s116
      %p118 = scmp.eq.s32.totalorder %s38, 0
      %p119 = por %p117, %p118
      %s121 = sadd.s32 %s120, 1
      %p124 = scmp.eq.s32.totalorder %s32, 1
      %p125 = scmp.ne.s32.totalorder %s120, %s122
      %p126 = scmp.eq.s32.totalorder %s32, 0
      %p127 = por %p125, %p126
      %p128 = scmp.ne.s32.totalorder %s120, %s122
      %p129 = scmp.eq.s32.totalorder %s37, 1
      %p130 = por %p128, %p129
      %p131 = scmp.ne.s32.totalorder %s122, %s123
      %p132 = scmp.eq.s32.totalorder %s37, 0
      %p133 = por %p131, %p132
      %p134 = scmp.ne.s32.totalorder %s122, %s123
      %p135 = scmp.eq.s32.totalorder %s38, 1
      %p136 = por %p134, %p135
      %p138 = scmp.ne.s32.totalorder %s123, %s137
      %p139 = scmp.eq.s32.totalorder %s38, 0
      %p140 = por %p138, %p139
      %s142 = sadd.s32 %s141, 1
      %p145 = scmp.eq.s32.totalorder %s32, 1
      %p146 = scmp.ne.s32.totalorder %s141, %s143
      %p147 = scmp.eq.s32.totalorder %s32, 0
      %p148 = por %p146, %p147
      %p149 = scmp.ne.s32.totalorder %s141, %s143
      %p150 = scmp.eq.s32.totalorder %s37, 1
      %p151 = por %p149, %p150
      %p152 = scmp.ne.s32.totalorder %s143, %s144
      %p153 = scmp.eq.s32.totalorder %s37, 0
      %p154 = por %p152, %p153
      %p155 = scmp.ne.s32.totalorder %s143, %s144
      %p156 = scmp.eq.s32.totalorder %s38, 1
      %p157 = por %p155, %p156
      %p159 = scmp.ne.s32.totalorder %s144, %s158
      %p160 = scmp.eq.s32.totalorder %s38, 0
      %p161 = por %p159, %p160
      %s163 = sadd.s32 %s162, 1
      %p166 = scmp.eq.s32.totalorder %s32, 1
      %p167 = scmp.ne.s32.totalorder %s162, %s164
      %p168 = scmp.eq.s32.totalorder %s32, 0
      %p169 = por %p167, %p168
      %p170 = scmp.ne.s32.totalorder %s162, %s164
      %p171 = scmp.eq.s32.totalorder %s37, 1
      %p172 = por %p170, %p171
      %p173 = scmp.ne.s32.totalorder %s164, %s165
      %p174 = scmp.eq.s32.totalorder %s37, 0
      %p175 = por %p173, %p174
      %p176 = scmp.ne.s32.totalorder %s164, %s165
      %p177 = scmp.eq.s32.totalorder %s38, 1
      %p178 = por %p176, %p177
      %p180 = scmp.ne.s32.totalorder %s165, %s179
      %p181 = scmp.eq.s32.totalorder %s38, 0
      %p182 = por %p180, %p181
      %s184 = sadd.s32 %s183, 1
      %p187 = scmp.eq.s32.totalorder %s32, 1
      %p188 = scmp.ne.s32.totalorder %s183, %s185
      %p189 = scmp.eq.s32.totalorder %s32, 0
      %p190 = por %p188, %p189
      %p191 = scmp.ne.s32.totalorder %s183, %s185
      %p192 = scmp.eq.s32.totalorder %s37, 1
      %p193 = por %p191, %p192
      %p194 = scmp.ne.s32.totalorder %s185, %s186
      %p195 = scmp.eq.s32.totalorder %s37, 0
      %p196 = por %p194, %p195
      %p197 = scmp.ne.s32.totalorder %s185, %s186
      %p198 = scmp.eq.s32.totalorder %s38, 1
      %p199 = por %p197, %p198
      %p201 = scmp.ne.s32.totalorder %s186, %s200
      %p202 = scmp.eq.s32.totalorder %s38, 0
      %p203 = por %p201, %p202
      %s204 = ssub.s32 %s39, %s51
      %s205 = ssub.s32 %s40, %s47
      %s206 = sor.u32 %s204, %s205
      %p207 = scmp.eq.s32.totalorder %s206, 0
      %s209 = sadd.s32 %s208, 1
      %s210 = scalar_select %p207, %s208, %s209
      %p213 = pneg %p207
      %p214 = scmp.eq.s32.totalorder %s32, 1
      %p215 = por %p213, %p214
      %p216 = scmp.ne.s32.totalorder %s208, %s211
      %p217 = scmp.eq.s32.totalorder %s32, 0
      %p218 = por %p216, %p217
      %p219 = scmp.ne.s32.totalorder %s208, %s211
      %p220 = scmp.eq.s32.totalorder %s37, 1
      %p221 = por %p219, %p220
      %p222 = scmp.ne.s32.totalorder %s211, %s212
      %p223 = scmp.eq.s32.totalorder %s37, 0
      %p224 = por %p222, %p223
      %p225 = scmp.ne.s32.totalorder %s211, %s212
      %p226 = scmp.eq.s32.totalorder %s38, 1
      %p227 = por %p225, %p226
      %p229 = scmp.ne.s32.totalorder %s212, %s228
      %p230 = scmp.eq.s32.totalorder %s38, 0
      %p231 = por %p229, %p230
      %s232 = ssub.s32 %s39, %s51
      %s233 = ssub.s32 %s40, %s47
      %s234 = sor.u32 %s232, %s233
      %p235 = scmp.eq.s32.totalorder %s234, 0
      %s237 = sadd.s32 %s236, 1
      %s238 = scalar_select %p235, %s236, %s237
      %p241 = pneg %p235
      %p242 = scmp.eq.s32.totalorder %s32, 1
      %p243 = por %p241, %p242
      %p244 = scmp.ne.s32.totalorder %s236, %s239
      %p245 = scmp.eq.s32.totalorder %s32, 0
      %p246 = por %p244, %p245
      %p247 = scmp.ne.s32.totalorder %s236, %s239
      %p248 = scmp.eq.s32.totalorder %s37, 1
      %p249 = por %p247, %p248
      %p250 = scmp.ne.s32.totalorder %s239, %s240
      %p251 = scmp.eq.s32.totalorder %s37, 0
      %p252 = por %p250, %p251
      %p253 = scmp.ne.s32.totalorder %s239, %s240
      %p254 = scmp.eq.s32.totalorder %s38, 1
      %p255 = por %p253, %p254
      %p257 = scmp.ne.s32.totalorder %s240, %s256
      %p258 = scmp.eq.s32.totalorder %s38, 0
      %p259 = por %p257, %p258
      %s260 = ssub.s32 %s39, %s51
      %s261 = ssub.s32 %s40, %s47
      %s262 = sor.u32 %s260, %s261
      %p263 = scmp.eq.s32.totalorder %s262, 0
      %s265 = sadd.s32 %s264, 1
      %s266 = scalar_select %p263, %s264, %s265
      %p269 = pneg %p263
      %p270 = scmp.eq.s32.totalorder %s32, 1
      %p271 = por %p269, %p270
      %p272 = scmp.ne.s32.totalorder %s264, %s267
      %p273 = scmp.eq.s32.totalorder %s32, 0
      %p274 = por %p272, %p273
      %p275 = scmp.ne.s32.totalorder %s264, %s267
      %p276 = scmp.eq.s32.totalorder %s37, 1
      %p277 = por %p275, %p276
      %p278 = scmp.ne.s32.totalorder %s267, %s268
      %p279 = scmp.eq.s32.totalorder %s37, 0
      %p280 = por %p278, %p279
      %p281 = scmp.ne.s32.totalorder %s267, %s268
      %p282 = scmp.eq.s32.totalorder %s38, 1
      %p283 = por %p281, %p282
      %p285 = scmp.ne.s32.totalorder %s268, %s284
      %p286 = scmp.eq.s32.totalorder %s38, 0
      %p287 = por %p285, %p286
      %s288 = ssub.s32 %s39, %s51
      %s289 = ssub.s32 %s40, %s47
      %s290 = sor.u32 %s288, %s289
      %p291 = scmp.eq.s32.totalorder %s290, 0
      %s293 = sadd.s32 %s292, 1
      %s294 = scalar_select %p291, %s292, %s293
      %p297 = pneg %p291
      %p298 = scmp.eq.s32.totalorder %s32, 1
      %p299 = por %p297, %p298
      %p300 = scmp.ne.s32.totalorder %s292, %s295
      %p301 = scmp.eq.s32.totalorder %s32, 0
      %p302 = por %p300, %p301
      %p303 = scmp.ne.s32.totalorder %s292, %s295
      %p304 = scmp.eq.s32.totalorder %s37, 1
      %p305 = por %p303, %p304
      %p306 = scmp.ne.s32.totalorder %s295, %s296
      %p307 = scmp.eq.s32.totalorder %s37, 0
      %p308 = por %p306, %p307
      %p309 = scmp.ne.s32.totalorder %s295, %s296
      %p310 = scmp.eq.s32.totalorder %s38, 1
      %p311 = por %p309, %p310
      %p313 = scmp.ne.s32.totalorder %s296, %s312
      %p314 = scmp.eq.s32.totalorder %s38, 0
      %p315 = por %p313, %p314
      %p316 = scmp.le.s32.totalorder 1, %s32
      %p317 = scmp.lt.s32.totalorder %s32, 3
      %p318 = pnand %p316, %p317
      %p319 = pneg %p318
      // Predicated region
      $region9: #{tpu_custom_call.1} parent=5 // pred_check
        _
      $region10: #{tpu_custom_call.1} parent=5 // pred_check_branch
        %321 = sbr.rel (%p318) target = $region12
      $region11: #{tpu_custom_call.1} parent=5 // pred_region
        %s322 = ssub.s32 %s32, 1
        // Predicated region
        $region13: #{tpu_custom_call.1} parent=11 // pred_check
          %p323 = pneg %p91
        $region14: #{tpu_custom_call.1} parent=11 // pred_check_branch
          %325 = sbr.rel (%p323) target = $region16
        $region15: #{tpu_custom_call.1} parent=11 // pred_region
          %s327 = ssub.s32 512, 512
          %328 = vsyncadd [#allocation10], %s327
          %s329 = sshll.u32 [#allocation9], 4
          %s330 = int_to_ptr.vmem [resolvable:$true] %s329
          %335 = dma.hbm_to_vmem [thread:$0]  %s1, 512, %s330, [#allocation10], 128, 128, 8
        $region16: #{tpu_custom_call.1} parent=11 // pred_fallthru
          _
        // Predicated region
        $region17: #{tpu_custom_call.1} parent=11 // pred_check
          %p336 = pneg %p112
        $region18: #{tpu_custom_call.1} parent=11 // pred_check_branch
          %338 = sbr.rel (%p336) target = $region20
        $region19: #{tpu_custom_call.1} parent=11 // pred_region
          _
        $region20: #{tpu_custom_call.1} parent=11 // pred_fallthru
          _
        // Predicated region
        $region21: #{tpu_custom_call.1} parent=11 // pred_check
          %p339 = pneg %p133
        $region22: #{tpu_custom_call.1} parent=11 // pred_check_branch
          %341 = sbr.rel (%p339) target = $region24
        $region23: #{tpu_custom_call.1} parent=11 // pred_region
          %s343 = ssub.s32 512, 512
          %344 = vsyncadd [#allocation10], %s343
          %s345 = sshll.u32 [#allocation11], 4
          %s346 = int_to_ptr.vmem [resolvable:$true] %s345
          %351 = dma.hbm_to_vmem [thread:$0]  %s3, 512, %s346, [#allocation10], 128, 128, 8
        $region24: #{tpu_custom_call.1} parent=11 // pred_fallthru
          _
        // Predicated region
        $region25: #{tpu_custom_call.1} parent=11 // pred_check
          %p352 = pneg %p154
        $region26: #{tpu_custom_call.1} parent=11 // pred_check_branch
          %354 = sbr.rel (%p352) target = $region28
        $region27: #{tpu_custom_call.1} parent=11 // pred_region
          _
        $region28: #{tpu_custom_call.1} parent=11 // pred_fallthru
          _
        // Predicated region
        $region29: #{tpu_custom_call.1} parent=11 // pred_check
          %p355 = pneg %p175
        $region30: #{tpu_custom_call.1} parent=11 // pred_check_branch
          %357 = sbr.rel (%p355) target = $region32
        $region31: #{tpu_custom_call.1} parent=11 // pred_region
          %s359 = ssub.s32 64, 64
          %360 = vsyncadd [#allocation8], %s359
          %s362 = sshll.u32 %s5, 4
          %s363 = int_to_ptr.vmem [resolvable:$true] %s362
          %365 = dma.vmem_to_smem %s363, 64, [#allocation12], [#allocation8]
        $region32: #{tpu_custom_call.1} parent=11 // pred_fallthru
          _
        // Predicated region
        $region33: #{tpu_custom_call.1} parent=11 // pred_check
          %p366 = pneg %p196
        $region34: #{tpu_custom_call.1} parent=11 // pred_check_branch
          %368 = sbr.rel (%p366) target = $region36
        $region35: #{tpu_custom_call.1} parent=11 // pred_region
          %s370 = ssub.s32 16, 16
          %371 = vsyncadd [#allocation14], %s370
          %s373 = sshll.u32 %s6, 4
          %s374 = int_to_ptr.vmem [resolvable:$true] %s373
          %376 = dma.vmem_to_smem %s374, 16, [#allocation13], [#allocation14]
        $region36: #{tpu_custom_call.1} parent=11 // pred_fallthru
          _
      $region12: #{tpu_custom_call.1} parent=5 // pred_fallthru
        _
      %p377 = scmp.lt.s32.totalorder %s32, 2
      // Predicated region
      $region37: #{tpu_custom_call.1} parent=5 // pred_check
        %p378 = pneg %p377
      $region38: #{tpu_custom_call.1} parent=5 // pred_check_branch
        %380 = sbr.rel (%p378) target = $region40
      $region39: #{tpu_custom_call.1} parent=5 // pred_region
        // Predicated region
        $region41: #{tpu_custom_call.1} parent=39 // pred_check
          %p381 = pneg %p64
        $region42: #{tpu_custom_call.1} parent=39 // pred_check_branch
          %383 = sbr.rel (%p381) target = $region44
        $region43: #{tpu_custom_call.1} parent=39 // pred_region
          %s384 = sand.u32 %s54, 1
          %s385 = scalar_lea.sflag [#allocation6], %s384
          %s386 = sand.u32 %s54, 1
          %s387 = smul.addr %s386, 8
          %s388 = scalar_lea.vmem [#allocation5], %s387
          %s390 = ssub.s32 128, 128
          %391 = vsyncadd %s385, %s390
          %s392 = smul.addr %s39, 128
          %s393 = scalar_lea.hbm %s0, %s392
          %s395 = sshll.u32 %s388, 4
          %s396 = int_to_ptr.vmem [resolvable:$true] %s395
          %398 = dma.hbm_to_vmem [thread:$0]  %s393, 128, %s396, %s385
        $region44: #{tpu_custom_call.1} parent=39 // pred_fallthru
          _
        // Predicated region
        $region45: #{tpu_custom_call.1} parent=39 // pred_check
          %p399 = pneg %p218
        $region46: #{tpu_custom_call.1} parent=39 // pred_check_branch
          %401 = sbr.rel (%p399) target = $region48
        $region47: #{tpu_custom_call.1} parent=39 // pred_region
          %s402 = sand.u32 %s208, 1
          %s403 = scalar_lea.sflag [#allocation16], %s402
          %s404 = sand.u32 %s208, 1
          %s405 = smul.addr %s404, 16
          %s406 = scalar_lea.vmem [#allocation15], %s405
          %s408 = ssub.s32 256, 256
          %409 = vsyncadd %s403, %s408
          %s410 = smul.addr %s39, 4
          %s411 = sadd.s32 %s40, %s410
          %s412 = smul.addr %s411, 64
          %s413 = scalar_lea.hbm %s7, %s412
          %s414 = sshll.u32 %s406, 4
          %s415 = int_to_ptr.vmem [resolvable:$true] %s414
          %420 = dma.hbm_to_vmem [thread:$0]  %s413, 256, %s415, %s403, 64, 64, 4
        $region48: #{tpu_custom_call.1} parent=39 // pred_fallthru
          _
      $region40: #{tpu_custom_call.1} parent=5 // pred_fallthru
        _
      %p421 = scmp.le.s32.totalorder 1, %s32
      %p422 = scmp.lt.s32.totalorder %s32, 3
      %p423 = pnand %p421, %p422
      %p424 = pneg %p423
      // Predicated region
      $region49: #{tpu_custom_call.1} parent=5 // pred_check
        _
      $region50: #{tpu_custom_call.1} parent=5 // pred_check_branch
        %426 = sbr.rel (%p423) target = $region52
      $region51: #{tpu_custom_call.1} parent=5 // pred_region
        %s427 = ssub.s32 %s32, 1
        %s428 = sand.u32 %s57, 1
        %s429 = scalar_lea.sflag [#allocation6], %s428
        %s430 = sand.u32 %s57, 1
        %s431 = smul.addr %s430, 8
        %s432 = scalar_lea.vmem [#allocation5], %s431
        // Predicated region
        $region53: #{tpu_custom_call.1} parent=51 // pred_check
          %p433 = pneg %p70
        $region54: #{tpu_custom_call.1} parent=51 // pred_check_branch
          %435 = sbr.rel (%p433) target = $region56
        $region55: #{tpu_custom_call.1} parent=51 // pred_region
          %436 = dma.done %s429, 128
        $region56: #{tpu_custom_call.1} parent=51 // pred_fallthru
          _
        // Predicated region
        $region57: #{tpu_custom_call.1} parent=51 // pred_check
          %p437 = pneg %p91
        $region58: #{tpu_custom_call.1} parent=51 // pred_check_branch
          %439 = sbr.rel (%p437) target = $region60
        $region59: #{tpu_custom_call.1} parent=51 // pred_region
          %440 = dma.done [#allocation10], 512
        $region60: #{tpu_custom_call.1} parent=51 // pred_fallthru
          _
        // Predicated region
        $region61: #{tpu_custom_call.1} parent=51 // pred_check
          %p441 = pneg %p133
        $region62: #{tpu_custom_call.1} parent=51 // pred_check_branch
          %443 = sbr.rel (%p441) target = $region64
        $region63: #{tpu_custom_call.1} parent=51 // pred_region
          %444 = dma.done [#allocation10], 512
        $region64: #{tpu_custom_call.1} parent=51 // pred_fallthru
          _
        // Predicated region
        $region65: #{tpu_custom_call.1} parent=51 // pred_check
          %p445 = pneg %p175
        $region66: #{tpu_custom_call.1} parent=51 // pred_check_branch
          %447 = sbr.rel (%p445) target = $region68
        $region67: #{tpu_custom_call.1} parent=51 // pred_region
          %448 = dma.done [#allocation8], 64
        $region68: #{tpu_custom_call.1} parent=51 // pred_fallthru
          _
        // Predicated region
        $region69: #{tpu_custom_call.1} parent=51 // pred_check
          %p449 = pneg %p196
        $region70: #{tpu_custom_call.1} parent=51 // pred_check_branch
          %451 = sbr.rel (%p449) target = $region72
        $region71: #{tpu_custom_call.1} parent=51 // pred_region
          %452 = dma.done [#allocation14], 16
        $region72: #{tpu_custom_call.1} parent=51 // pred_fallthru
          _
        %s453 = sand.u32 %s211, 1
        %s454 = scalar_lea.sflag [#allocation16], %s453
        %s455 = sand.u32 %s211, 1
        %s456 = smul.addr %s455, 16
        %s457 = scalar_lea.vmem [#allocation15], %s456
        // Predicated region
        $region73: #{tpu_custom_call.1} parent=51 // pred_check
          %p458 = pneg %p224
        $region74: #{tpu_custom_call.1} parent=51 // pred_check_branch
          %460 = sbr.rel (%p458) target = $region76
        $region75: #{tpu_custom_call.1} parent=51 // pred_region
          %461 = dma.done %s454, 256
        $region76: #{tpu_custom_call.1} parent=51 // pred_fallthru
          _
        %462 = sfence
        %s463 = sand.u32 %s57, 1
        %s464 = scalar_lea.sflag [#allocation6], %s463
        %s465 = sand.u32 %s57, 1
        %s466 = smul.addr %s465, 8
        %s467 = scalar_lea.vmem [#allocation5], %s466
        %p468 = pneg %p70
        %p469 = pneg %p67
        %p470 = pneg %p91
        %p471 = pneg %p88
        %p472 = pneg %p112
        %p473 = pneg %p109
        %p474 = pneg %p133
        %p475 = pneg %p130
        %p476 = pneg %p154
        %p477 = pneg %p151
        %p478 = pneg %p175
        %p479 = pneg %p172
        %p480 = pneg %p196
        %p481 = pneg %p193
        %s482 = sand.u32 %s211, 1
        %s483 = scalar_lea.sflag [#allocation16], %s482
        %s484 = sand.u32 %s211, 1
        %s485 = smul.addr %s484, 16
        %s486 = scalar_lea.vmem [#allocation15], %s485
        %p487 = pneg %p224
        %p488 = pneg %p221
        %p489 = pneg %p252
        %p490 = pneg %p249
        %s491 = sand.u32 %s239, 1
        %s492 = scalar_lea.sflag [#allocation7], %s491
        %s493 = sand.u32 %s239, 1
        %s494 = smul.addr %s493, 8
        %s495 = scalar_lea.vmem [#allocation17], %s494
        %p496 = pneg %p280
        %p497 = pneg %p277
        %s498 = sand.u32 %s37, 1
        %s499 = scalar_lea.sflag [#allocation19], %s498
        %s500 = sand.u32 %s267, 1
        %s501 = smul.addr %s500, 32
        %s502 = scalar_lea.vmem [#allocation18], %s501
        %p503 = pneg %p308
        %p504 = pneg %p305
        %s505 = sand.u32 %s37, 1
        %s506 = scalar_lea.sflag [#allocation19], %s505
        %s507 = sand.u32 %s295, 1
        %s508 = smul.addr %s507, 32
        %s509 = scalar_lea.vmem [#allocation20], %s508
        %p510 = scmp.eq.s32.totalorder %s42, 0
        // Predicated region
        $region77: #{tpu_custom_call.1} parent=51 // pred_check
          %p511 = pneg %p510
        $region78: #{tpu_custom_call.1} parent=51 // pred_check_branch
          %513 = sbr.rel (%p511) target = $region80
        $region79: #{tpu_custom_call.1} parent=51 // pred_region
          %v514 = vld [vmem:[%s432] sm:$0xff]
          %v515 = vld [vmem:[#allocation9] sm:$0xff]
          %v516 = vld [vmem:[#allocation9 + $0x8] sm:$0xff]
          %v517 = vld [vmem:[#allocation9 + $0x10] sm:$0xff]
          %v518 = vld [vmem:[#allocation9 + $0x18] sm:$0xff]
          %v519 = vld [vmem:[%s2] sm:$0x1]
          %v521 = vlaneseq
          %v522 = vshrl.u32 %v521, 7
          %v523 = vsub.s32 0, %v522
          %v524 = vrot.slane %v519, %v523
          %vm526 = vcmask 261120
          %v528 = vsel %vm526, %v514, 0
          %530 = vmatprep.subr.mxu0 0.0
          %531 = vmatpush1.msra.mxu0 0.0
          %532 = vmatprep.subr.mxu0 0.0
          %533 = vmatpush1.msra.mxu0 0.0
          %534 = vmatprep.subr.mxu0 0.0
          %535 = vmatpush1.msra.mxu0 0.0
          %536 = vmatprep.subr.mxu0 0.0
          %537 = vmatpush1.msra.mxu0 0.0
          %538 = vmatprep.subr.mxu0 0.0
          %539 = vmatpush1.msra.mxu0 0.0
          %540 = vmatprep.subr.mxu0 0.0
          %541 = vmatpush1.msra.mxu0 0.0
          %542 = vmatprep.subr.mxu0 0.0
          %543 = vmatpush1.msra.mxu0 0.0
          %544 = vmatprep.subr.mxu0 0.0
          %545 = vmatpush1.msra.mxu0 0.0
          %546 = vmatprep.subr.mxu0 0.0
          %547 = vmatpush1.msra.mxu0 0.0
          %548 = vmatprep.subr.mxu0 0.0
          %549 = vmatpush1.msra.mxu0 0.0
          %550 = vmatprep.subr.mxu0 0.0
          %551 = vmatpush1.msra.mxu0 0.0
          %552 = vmatprep.subr.mxu0 0.0
          %553 = vmatpush1.msra.mxu0 0.0
          %554 = vmatprep.subr.mxu0 0.0
          %555 = vmatpush1.msra.mxu0 %v518
          %556 = vmatprep.subr.mxu0 0.0
          %557 = vmatpush1.msra.mxu0 %v517
          %558 = vmatprep.subr.mxu0 0.0
          %559 = vmatpush1.msra.mxu0 %v516
          %560 = vmatprep.subr.mxu0 0.0
          %561 = vmatpush1.msra.mxu0 %v515
          %562 = vmatprep.subr.mxu0 0.0
          %563 = vmatpush2.msra.mxu0 0.0
          %564 = vmatprep.subr.mxu0 0.0
          %565 = vmatpush2.msra.mxu0 0.0
          %566 = vmatprep.subr.mxu0 0.0
          %567 = vmatpush2.msra.mxu0 0.0
          %568 = vmatprep.subr.mxu0 0.0
          %569 = vmatpush2.msra.mxu0 0.0
          %570 = vmatprep.subr.mxu0 0.0
          %571 = vmatpush2.msra.mxu0 0.0
          %572 = vmatprep.subr.mxu0 0.0
          %573 = vmatpush2.msra.mxu0 0.0
          %574 = vmatprep.subr.mxu0 0.0
          %575 = vmatpush2.msra.mxu0 0.0
          %576 = vmatprep.subr.mxu0 0.0
          %577 = vmatpush2.msra.mxu0 0.0
          %578 = vmatprep.subr.mxu0 0.0
          %579 = vmatpush2.msra.mxu0 0.0
          %580 = vmatprep.subr.mxu0 0.0
          %581 = vmatpush2.msra.mxu0 0.0
          %582 = vmatprep.subr.mxu0 0.0
          %583 = vmatpush2.msra.mxu0 0.0
          %584 = vmatprep.subr.mxu0 0.0
          %585 = vmatpush2.msra.mxu0 0.0
          %586 = vmatprep.subr.mxu0 0.0
          %587 = vmatpush2.msra.mxu0 0.0
          %588 = vmatprep.subr.mxu0 0.0
          %589 = vmatpush2.msra.mxu0 0.0
          %590 = vmatprep.subr.mxu0 0.0
          %591 = vmatpush2.msra.mxu0 0.0
          %592 = vmatprep.subr.mxu0 0.0
          %593 = vmatpush2.msra.mxu0 0.0
          %594 = vmatprep.mubr.f32.mxu0 0.0
          %595 = vmatmul.mubr.f32.gmra.mxu0 %v528
          %v596 = vpop.f32.mrf.mxu0
          %v597 = vadd.f32 %v524, %v596
          %v598 = vpop.f32.mrf.mxu0
          %599 = vdwg.mxu0
          %v600 = vmul.f32 %v597, 0.35355338
          %601 = vst.msk [vmem:[#allocation2] sm:$0xff] %vm526, %v600
          %603 = vrot.lane.b32.xlu0 %v597, 96
          %v604 = vpop.permute.xlu0 %603
          %606 = vxpose.xlu0.b32.start [1/16] %v604, 128
          %607 = vxpose.xlu0.b32.cont [2/16] 0.0, 128
          %608 = vxpose.xlu0.b32.cont [3/16] 0.0, 128
          %609 = vxpose.xlu0.b32.cont [4/16] 0.0, 128
          %610 = vxpose.xlu0.b32.cont [5/16] 0.0, 128
          %611 = vxpose.xlu0.b32.cont [6/16] 0.0, 128
          %612 = vxpose.xlu0.b32.cont [7/16] 0.0, 128
          %613 = vxpose.xlu0.b32.cont [8/16] 0.0, 128
          %614 = vxpose.xlu0.b32.cont [9/16] 0.0, 128
          %615 = vxpose.xlu0.b32.cont [10/16] 0.0, 128
          %616 = vxpose.xlu0.b32.cont [11/16] 0.0, 128
          %617 = vxpose.xlu0.b32.cont [12/16] 0.0, 128
          %618 = vxpose.xlu0.b32.cont [13/16] 0.0, 128
          %619 = vxpose.xlu0.b32.cont [14/16] 0.0, 128
          %620 = vxpose.xlu0.b32.cont [15/16] 0.0, 128
          %621 = vxpose.xlu0.b32.end [16/16] 0.0, 128
          %v622 = vpop.trf.xlu0
          %v623 = vpop.trf.xlu0
          %v624 = vpop.trf.xlu0
          %v625 = vpop.trf.xlu0
          %v626 = vpop.trf.xlu0
          %v627 = vpop.trf.xlu0
          %v628 = vpop.trf.xlu0
          %v629 = vpop.trf.xlu0
          %v630 = vpop.trf.xlu0
          %v631 = vpop.trf.xlu0
          %v632 = vpop.trf.xlu0
          %v633 = vpop.trf.xlu0
          %v634 = vpop.trf.xlu0
          %v635 = vpop.trf.xlu0
          %v636 = vpop.trf.xlu0
          %v637 = vpop.trf.xlu0
          %vm638 = vcmask 64512
          %639 = vst.msk [vmem:[#allocation3] sm:$0xff] %vm638, %v622
          %640 = vst.msk [vmem:[#allocation3 + $0x8] sm:$0xff] %vm638, %v623
          %641 = vst.msk [vmem:[#allocation3 + $0x10] sm:$0xff] %vm638, %v624
          %642 = vst.msk [vmem:[#allocation3 + $0x18] sm:$0xff] %vm638, %v625
          %643 = vrot.lane.b32.xlu0 %v597, 64
          %v644 = vpop.permute.xlu0 %643
          %646 = vst.msk [vmem:[#allocation4] sm:$0xff] %vm526, %v644
        $region80: #{tpu_custom_call.1} parent=51 // pred_fallthru
          _
        %s647 = smul.u32 %s42, 8
        %s648 = scalar_lea.vmem [#allocation2], %s647
        %v649 = vld [vmem:[%s648] sm:$0xff]
        %v650 = vld [vmem:[#allocation3] sm:$0xff]
        %vm651 = vcmask 64512
        %v653 = vsel %vm651, %v649, 0
        %655 = vmatprep.subr.mxu0 0.0
        %656 = vmatpush1.msra.mxu0 0.0
        %657 = vmatprep.subr.mxu0 0.0
        %658 = vmatpush1.msra.mxu0 0.0
        %659 = vmatprep.subr.mxu0 0.0
        %660 = vmatpush1.msra.mxu0 0.0
        %661 = vmatprep.subr.mxu0 0.0
        %662 = vmatpush1.msra.mxu0 0.0
        %663 = vmatprep.subr.mxu0 0.0
        %664 = vmatpush1.msra.mxu0 0.0
        %665 = vmatprep.subr.mxu0 0.0
        %666 = vmatpush1.msra.mxu0 0.0
        %667 = vmatprep.subr.mxu0 0.0
        %668 = vmatpush1.msra.mxu0 0.0
        %669 = vmatprep.subr.mxu0 0.0
        %670 = vmatpush1.msra.mxu0 0.0
        %671 = vmatprep.subr.mxu0 0.0
        %672 = vmatpush1.msra.mxu0 0.0
        %673 = vmatprep.subr.mxu0 0.0
        %674 = vmatpush1.msra.mxu0 0.0
        %675 = vmatprep.subr.mxu0 0.0
        %676 = vmatpush1.msra.mxu0 0.0
        %677 = vmatprep.subr.mxu0 0.0
        %678 = vmatpush1.msra.mxu0 0.0
        %679 = vmatprep.subr.mxu0 0.0
        %680 = vmatpush1.msra.mxu0 0.0
        %681 = vmatprep.subr.mxu0 0.0
        %682 = vmatpush1.msra.mxu0 0.0
        %683 = vmatprep.subr.mxu0 0.0
        %684 = vmatpush1.msra.mxu0 0.0
        %685 = vmatprep.subr.mxu0 0.0
        %686 = vmatpush1.msra.mxu0 %v650
        %687 = vmatprep.subr.mxu0 0.0
        %688 = vmatpush2.msra.mxu0 0.0
        %689 = vmatprep.subr.mxu0 0.0
        %690 = vmatpush2.msra.mxu0 0.0
        %691 = vmatprep.subr.mxu0 0.0
        %692 = vmatpush2.msra.mxu0 0.0
        %693 = vmatprep.subr.mxu0 0.0
        %694 = vmatpush2.msra.mxu0 0.0
        %695 = vmatprep.subr.mxu0 0.0
        %696 = vmatpush2.msra.mxu0 0.0
        %697 = vmatprep.subr.mxu0 0.0
        %698 = vmatpush2.msra.mxu0 0.0
        %699 = vmatprep.subr.mxu0 0.0
        %700 = vmatpush2.msra.mxu0 0.0
        %701 = vmatprep.subr.mxu0 0.0
        %702 = vmatpush2.msra.mxu0 0.0
        %703 = vmatprep.subr.mxu0 0.0
        %704 = vmatpush2.msra.mxu0 0.0
        %705 = vmatprep.subr.mxu0 0.0
        %706 = vmatpush2.msra.mxu0 0.0
        %707 = vmatprep.subr.mxu0 0.0
        %708 = vmatpush2.msra.mxu0 0.0
        %709 = vmatprep.subr.mxu0 0.0
        %710 = vmatpush2.msra.mxu0 0.0
        %711 = vmatprep.subr.mxu0 0.0
        %712 = vmatpush2.msra.mxu0 0.0
        %713 = vmatprep.subr.mxu0 0.0
        %714 = vmatpush2.msra.mxu0 0.0
        %715 = vmatprep.subr.mxu0 0.0
        %716 = vmatpush2.msra.mxu0 0.0
        %717 = vmatprep.subr.mxu0 0.0
        %718 = vmatpush2.msra.mxu0 0.0
        %719 = vmatprep.mubr.f32.mxu0 0.0
        %720 = vmatmul.mubr.f32.gmra.mxu0 %v653
        %v721 = vpop.f32.mrf.mxu0
        %v722 = vadd.f32 0.0, %v721
        %v723 = vpop.f32.mrf.mxu0
        %724 = vdwg.mxu0
        %v725 = vld [vmem:[#allocation3 + $0x8] sm:$0xff]
        %726 = vrot.lane.b32.xlu0 %v649, 120
        %v727 = vpop.permute.xlu0 %726
        %v728 = vsel %vm651, %v727, 0
        %730 = vmatprep.subr.mxu0 0.0
        %731 = vmatpush1.msra.mxu0 0.0
        %732 = vmatprep.subr.mxu0 0.0
        %733 = vmatpush1.msra.mxu0 0.0
        %734 = vmatprep.subr.mxu0 0.0
        %735 = vmatpush1.msra.mxu0 0.0
        %736 = vmatprep.subr.mxu0 0.0
        %737 = vmatpush1.msra.mxu0 0.0
        %738 = vmatprep.subr.mxu0 0.0
        %739 = vmatpush1.msra.mxu0 0.0
        %740 = vmatprep.subr.mxu0 0.0
        %741 = vmatpush1.msra.mxu0 0.0
        %742 = vmatprep.subr.mxu0 0.0
        %743 = vmatpush1.msra.mxu0 0.0
        %744 = vmatprep.subr.mxu0 0.0
        %745 = vmatpush1.msra.mxu0 0.0
        %746 = vmatprep.subr.mxu0 0.0
        %747 = vmatpush1.msra.mxu0 0.0
        %748 = vmatprep.subr.mxu0 0.0
        %749 = vmatpush1.msra.mxu0 0.0
        %750 = vmatprep.subr.mxu0 0.0
        %751 = vmatpush1.msra.mxu0 0.0
        %752 = vmatprep.subr.mxu0 0.0
        %753 = vmatpush1.msra.mxu0 0.0
        %754 = vmatprep.subr.mxu0 0.0
        %755 = vmatpush1.msra.mxu0 0.0
        %756 = vmatprep.subr.mxu0 0.0
        %757 = vmatpush1.msra.mxu0 0.0
        %758 = vmatprep.subr.mxu0 0.0
        %759 = vmatpush1.msra.mxu0 0.0
        %760 = vmatprep.subr.mxu0 0.0
        %761 = vmatpush1.msra.mxu0 %v725
        %762 = vmatprep.subr.mxu0 0.0
        %763 = vmatpush2.msra.mxu0 0.0
        %764 = vmatprep.subr.mxu0 0.0
        %765 = vmatpush2.msra.mxu0 0.0
        %766 = vmatprep.subr.mxu0 0.0
        %767 = vmatpush2.msra.mxu0 0.0
        %768 = vmatprep.subr.mxu0 0.0
        %769 = vmatpush2.msra.mxu0 0.0
        %770 = vmatprep.subr.mxu0 0.0
        %771 = vmatpush2.msra.mxu0 0.0
        %772 = vmatprep.subr.mxu0 0.0
        %773 = vmatpush2.msra.mxu0 0.0
        %774 = vmatprep.subr.mxu0 0.0
        %775 = vmatpush2.msra.mxu0 0.0
        %776 = vmatprep.subr.mxu0 0.0
        %777 = vmatpush2.msra.mxu0 0.0
        %778 = vmatprep.subr.mxu0 0.0
        %779 = vmatpush2.msra.mxu0 0.0
        %780 = vmatprep.subr.mxu0 0.0
        %781 = vmatpush2.msra.mxu0 0.0
        %782 = vmatprep.subr.mxu0 0.0
        %783 = vmatpush2.msra.mxu0 0.0
        %784 = vmatprep.subr.mxu0 0.0
        %785 = vmatpush2.msra.mxu0 0.0
        %786 = vmatprep.subr.mxu0 0.0
        %787 = vmatpush2.msra.mxu0 0.0
        %788 = vmatprep.subr.mxu0 0.0
        %789 = vmatpush2.msra.mxu0 0.0
        %790 = vmatprep.subr.mxu0 0.0
        %791 = vmatpush2.msra.mxu0 0.0
        %792 = vmatprep.subr.mxu0 0.0
        %793 = vmatpush2.msra.mxu0 0.0
        %794 = vmatprep.mubr.f32.mxu0 0.0
        %795 = vmatmul.mubr.f32.gmra.mxu0 %v728
        %v796 = vpop.f32.mrf.mxu0
        %v797 = vadd.f32 0.0, %v796
        %v798 = vpop.f32.mrf.mxu0
        %799 = vdwg.mxu0
        %v800 = vld [vmem:[#allocation3 + $0x10] sm:$0xff]
        %801 = vrot.lane.b32.xlu0 %v649, 112
        %v802 = vpop.permute.xlu0 %801
        %v803 = vsel %vm651, %v802, 0
        %805 = vmatprep.subr.mxu0 0.0
        %806 = vmatpush1.msra.mxu0 0.0
        %807 = vmatprep.subr.mxu0 0.0
        %808 = vmatpush1.msra.mxu0 0.0
        %809 = vmatprep.subr.mxu0 0.0
        %810 = vmatpush1.msra.mxu0 0.0
        %811 = vmatprep.subr.mxu0 0.0
        %812 = vmatpush1.msra.mxu0 0.0
        %813 = vmatprep.subr.mxu0 0.0
        %814 = vmatpush1.msra.mxu0 0.0
        %815 = vmatprep.subr.mxu0 0.0
        %816 = vmatpush1.msra.mxu0 0.0
        %817 = vmatprep.subr.mxu0 0.0
        %818 = vmatpush1.msra.mxu0 0.0
        %819 = vmatprep.subr.mxu0 0.0
        %820 = vmatpush1.msra.mxu0 0.0
        %821 = vmatprep.subr.mxu0 0.0
        %822 = vmatpush1.msra.mxu0 0.0
        %823 = vmatprep.subr.mxu0 0.0
        %824 = vmatpush1.msra.mxu0 0.0
        %825 = vmatprep.subr.mxu0 0.0
        %826 = vmatpush1.msra.mxu0 0.0
        %827 = vmatprep.subr.mxu0 0.0
        %828 = vmatpush1.msra.mxu0 0.0
        %829 = vmatprep.subr.mxu0 0.0
        %830 = vmatpush1.msra.mxu0 0.0
        %831 = vmatprep.subr.mxu0 0.0
        %832 = vmatpush1.msra.mxu0 0.0
        %833 = vmatprep.subr.mxu0 0.0
        %834 = vmatpush1.msra.mxu0 0.0
        %835 = vmatprep.subr.mxu0 0.0
        %836 = vmatpush1.msra.mxu0 %v800
        %837 = vmatprep.subr.mxu0 0.0
        %838 = vmatpush2.msra.mxu0 0.0
        %839 = vmatprep.subr.mxu0 0.0
        %840 = vmatpush2.msra.mxu0 0.0
        %841 = vmatprep.subr.mxu0 0.0
        %842 = vmatpush2.msra.mxu0 0.0
        %843 = vmatprep.subr.mxu0 0.0
        %844 = vmatpush2.msra.mxu0 0.0
        %845 = vmatprep.subr.mxu0 0.0
        %846 = vmatpush2.msra.mxu0 0.0
        %847 = vmatprep.subr.mxu0 0.0
        %848 = vmatpush2.msra.mxu0 0.0
        %849 = vmatprep.subr.mxu0 0.0
        %850 = vmatpush2.msra.mxu0 0.0
        %851 = vmatprep.subr.mxu0 0.0
        %852 = vmatpush2.msra.mxu0 0.0
        %853 = vmatprep.subr.mxu0 0.0
        %854 = vmatpush2.msra.mxu0 0.0
        %855 = vmatprep.subr.mxu0 0.0
        %856 = vmatpush2.msra.mxu0 0.0
        %857 = vmatprep.subr.mxu0 0.0
        %858 = vmatpush2.msra.mxu0 0.0
        %859 = vmatprep.subr.mxu0 0.0
        %860 = vmatpush2.msra.mxu0 0.0
        %861 = vmatprep.subr.mxu0 0.0
        %862 = vmatpush2.msra.mxu0 0.0
        %863 = vmatprep.subr.mxu0 0.0
        %864 = vmatpush2.msra.mxu0 0.0
        %865 = vmatprep.subr.mxu0 0.0
        %866 = vmatpush2.msra.mxu0 0.0
        %867 = vmatprep.subr.mxu0 0.0
        %868 = vmatpush2.msra.mxu0 0.0
        %869 = vmatprep.mubr.f32.mxu0 0.0
        %870 = vmatmul.mubr.f32.gmra.mxu0 %v803
        %v871 = vpop.f32.mrf.mxu0
        %v872 = vadd.f32 0.0, %v871
        %v873 = vpop.f32.mrf.mxu0
        %874 = vdwg.mxu0
        %v875 = vld [vmem:[#allocation3 + $0x18] sm:$0xff]
        %876 = vrot.lane.b32.xlu0 %v649, 104
        %v877 = vpop.permute.xlu0 %876
        %v878 = vsel %vm651, %v877, 0
        %880 = vmatprep.subr.mxu0 0.0
        %881 = vmatpush1.msra.mxu0 0.0
        %882 = vmatprep.subr.mxu0 0.0
        %883 = vmatpush1.msra.mxu0 0.0
        %884 = vmatprep.subr.mxu0 0.0
        %885 = vmatpush1.msra.mxu0 0.0
        %886 = vmatprep.subr.mxu0 0.0
        %887 = vmatpush1.msra.mxu0 0.0
        %888 = vmatprep.subr.mxu0 0.0
        %889 = vmatpush1.msra.mxu0 0.0
        %890 = vmatprep.subr.mxu0 0.0
        %891 = vmatpush1.msra.mxu0 0.0
        %892 = vmatprep.subr.mxu0 0.0
        %893 = vmatpush1.msra.mxu0 0.0
        %894 = vmatprep.subr.mxu0 0.0
        %895 = vmatpush1.msra.mxu0 0.0
        %896 = vmatprep.subr.mxu0 0.0
        %897 = vmatpush1.msra.mxu0 0.0
        %898 = vmatprep.subr.mxu0 0.0
        %899 = vmatpush1.msra.mxu0 0.0
        %900 = vmatprep.subr.mxu0 0.0
        %901 = vmatpush1.msra.mxu0 0.0
        %902 = vmatprep.subr.mxu0 0.0
        %903 = vmatpush1.msra.mxu0 0.0
        %904 = vmatprep.subr.mxu0 0.0
        %905 = vmatpush1.msra.mxu0 0.0
        %906 = vmatprep.subr.mxu0 0.0
        %907 = vmatpush1.msra.mxu0 0.0
        %908 = vmatprep.subr.mxu0 0.0
        %909 = vmatpush1.msra.mxu0 0.0
        %910 = vmatprep.subr.mxu0 0.0
        %911 = vmatpush1.msra.mxu0 %v875
        %912 = vmatprep.subr.mxu0 0.0
        %913 = vmatpush2.msra.mxu0 0.0
        %914 = vmatprep.subr.mxu0 0.0
        %915 = vmatpush2.msra.mxu0 0.0
        %916 = vmatprep.subr.mxu0 0.0
        %917 = vmatpush2.msra.mxu0 0.0
        %918 = vmatprep.subr.mxu0 0.0
        %919 = vmatpush2.msra.mxu0 0.0
        %920 = vmatprep.subr.mxu0 0.0
        %921 = vmatpush2.msra.mxu0 0.0
        %922 = vmatprep.subr.mxu0 0.0
        %923 = vmatpush2.msra.mxu0 0.0
        %924 = vmatprep.subr.mxu0 0.0
        %925 = vmatpush2.msra.mxu0 0.0
        %926 = vmatprep.subr.mxu0 0.0
        %927 = vmatpush2.msra.mxu0 0.0
        %928 = vmatprep.subr.mxu0 0.0
        %929 = vmatpush2.msra.mxu0 0.0
        %930 = vmatprep.subr.mxu0 0.0
        %931 = vmatpush2.msra.mxu0 0.0
        %932 = vmatprep.subr.mxu0 0.0
        %933 = vmatpush2.msra.mxu0 0.0
        %934 = vmatprep.subr.mxu0 0.0
        %935 = vmatpush2.msra.mxu0 0.0
        %936 = vmatprep.subr.mxu0 0.0
        %937 = vmatpush2.msra.mxu0 0.0
        %938 = vmatprep.subr.mxu0 0.0
        %939 = vmatpush2.msra.mxu0 0.0
        %940 = vmatprep.subr.mxu0 0.0
        %941 = vmatpush2.msra.mxu0 0.0
        %942 = vmatprep.subr.mxu0 0.0
        %943 = vmatpush2.msra.mxu0 0.0
        %944 = vmatprep.mubr.f32.mxu0 0.0
        %945 = vmatmul.mubr.f32.gmra.mxu0 %v878
        %v946 = vpop.f32.mrf.mxu0
        %v947 = vadd.f32 0.0, %v946
        %v948 = vpop.f32.mrf.mxu0
        %949 = vdwg.mxu0
        %v950 = vsel %vm651, %v722, -inf
        %951 = vmax.xlane.f32.xlu0 %v950
        %v952 = vpop.xlane.xlu0 %951
        %v953 = vsel %vm651, %v797, -inf
        %954 = vmax.xlane.f32.xlu0 %v953
        %v955 = vpop.xlane.xlu0 %954
        %v956 = vsel %vm651, %v872, -inf
        %957 = vmax.xlane.f32.xlu0 %v956
        %v958 = vpop.xlane.xlu0 %957
        %v959 = vsel %vm651, %v947, -inf
        %960 = vmax.xlane.f32.xlu0 %v959
        %v961 = vpop.xlane.xlu0 %960
        %v962 = vsub.f32 %v722, %v952
        %v963 = vsub.f32 %v797, %v955
        %v964 = vsub.f32 %v872, %v958
        %v965 = vsub.f32 %v947, %v961
        %v966 = vmul.f32 %v962, 1.442695
        %v967 = vpow.pop %v966
        %v968 = vmul.f32 %v963, 1.442695
        %v969 = vpow.pop %v968
        %v970 = vmul.f32 %v964, 1.442695
        %v971 = vpow.pop %v970
        %v972 = vmul.f32 %v965, 1.442695
        %v973 = vpow.pop %v972
        %v974 = vsel %vm651, %v967, 0.0
        %975 = vadd.xlane.f32.xlu0 %v974
        %v976 = vpop.xlane.xlu0 %975
        %v977 = vsel %vm651, %v969, 0.0
        %978 = vadd.xlane.f32.xlu0 %v977
        %v979 = vpop.xlane.xlu0 %978
        %v980 = vsel %vm651, %v971, 0.0
        %981 = vadd.xlane.f32.xlu0 %v980
        %v982 = vpop.xlane.xlu0 %981
        %v983 = vsel %vm651, %v973, 0.0
        %984 = vadd.xlane.f32.xlu0 %v983
        %v985 = vpop.xlane.xlu0 %984
        %v986 = vrcp.pop %v976
        %v987 = vmul.f32 1.0, %v986
        %v988 = vrcp.pop %v979
        %v989 = vmul.f32 1.0, %v988
        %v990 = vrcp.pop %v982
        %v991 = vmul.f32 1.0, %v990
        %v992 = vrcp.pop %v985
        %v993 = vmul.f32 1.0, %v992
        %v994 = vmul.f32 %v967, %v987
        %v995 = vmul.f32 %v969, %v989
        %v996 = vmul.f32 %v971, %v991
        %v997 = vmul.f32 %v973, %v993
        %998 = vst.msk [vmem:[%s502] sm:$0xff] %vm651, %v994
        %999 = vst.msk [vmem:[%s502 + $0x8] sm:$0xff] %vm651, %v995
        %1000 = vst.msk [vmem:[%s502 + $0x10] sm:$0xff] %vm651, %v996
        %1001 = vst.msk [vmem:[%s502 + $0x18] sm:$0xff] %vm651, %v997
        %s1002 = sld [smem:[#allocation12]]
        %v1003 = vstv %s1002
        %v1004 = vmul.f32 %v722, %v1003
        %s1005 = sld [smem:[#allocation12 + $0x1]]
        %v1006 = vstv %s1005
        %v1007 = vmul.f32 %v797, %v1006
        %v1008 = vadd.f32 %v1004, %v1007
        %s1009 = sld [smem:[#allocation12 + $0x2]]
        %v1010 = vstv %s1009
        %v1011 = vmul.f32 %v872, %v1010
        %v1012 = vadd.f32 %v1008, %v1011
        %s1013 = sld [smem:[#allocation12 + $0x3]]
        %v1014 = vstv %s1013
        %v1015 = vmul.f32 %v947, %v1014
        %v1016 = vadd.f32 %v1012, %v1015
        %s1017 = sld [smem:[#allocation13]]
        %v1018 = vstv %s1017
        %v1019 = vadd.f32 %v1016, %v1018
        %v1020 = vtanh.pop %v1019
        %v1021 = vadd.f32 %v1020, 1.0
        %v1022 = vmul.f32 %v1021, 0.5
        %s1023 = sld [smem:[#allocation12 + $0x80]]
        %v1024 = vstv %s1023
        %v1025 = vmul.f32 %v722, %v1024
        %s1026 = sld [smem:[#allocation12 + $0x81]]
        %v1027 = vstv %s1026
        %v1028 = vmul.f32 %v797, %v1027
        %v1029 = vadd.f32 %v1025, %v1028
        %s1030 = sld [smem:[#allocation12 + $0x82]]
        %v1031 = vstv %s1030
        %v1032 = vmul.f32 %v872, %v1031
        %v1033 = vadd.f32 %v1029, %v1032
        %s1034 = sld [smem:[#allocation12 + $0x83]]
        %v1035 = vstv %s1034
        %v1036 = vmul.f32 %v947, %v1035
        %v1037 = vadd.f32 %v1033, %v1036
        %s1038 = sld [smem:[#allocation13 + $0x1]]
        %v1039 = vstv %s1038
        %v1040 = vadd.f32 %v1037, %v1039
        %v1041 = vtanh.pop %v1040
        %v1042 = vadd.f32 %v1041, 1.0
        %v1043 = vmul.f32 %v1042, 0.5
        %s1044 = sld [smem:[#allocation12 + $0x100]]
        %v1045 = vstv %s1044
        %v1046 = vmul.f32 %v722, %v1045
        %s1047 = sld [smem:[#allocation12 + $0x101]]
        %v1048 = vstv %s1047
        %v1049 = vmul.f32 %v797, %v1048
        %v1050 = vadd.f32 %v1046, %v1049
        %s1051 = sld [smem:[#allocation12 + $0x102]]
        %v1052 = vstv %s1051
        %v1053 = vmul.f32 %v872, %v1052
        %v1054 = vadd.f32 %v1050, %v1053
        %s1055 = sld [smem:[#allocation12 + $0x103]]
        %v1056 = vstv %s1055
        %v1057 = vmul.f32 %v947, %v1056
        %v1058 = vadd.f32 %v1054, %v1057
        %s1059 = sld [smem:[#allocation13 + $0x2]]
        %v1060 = vstv %s1059
        %v1061 = vadd.f32 %v1058, %v1060
        %v1062 = vtanh.pop %v1061
        %v1063 = vadd.f32 %v1062, 1.0
        %v1064 = vmul.f32 %v1063, 0.5
        %s1065 = sld [smem:[#allocation12 + $0x180]]
        %v1066 = vstv %s1065
        %v1067 = vmul.f32 %v722, %v1066
        %s1068 = sld [smem:[#allocation12 + $0x181]]
        %v1069 = vstv %s1068
        %v1070 = vmul.f32 %v797, %v1069
        %v1071 = vadd.f32 %v1067, %v1070
        %s1072 = sld [smem:[#allocation12 + $0x182]]
        %v1073 = vstv %s1072
        %v1074 = vmul.f32 %v872, %v1073
        %v1075 = vadd.f32 %v1071, %v1074
        %s1076 = sld [smem:[#allocation12 + $0x183]]
        %v1077 = vstv %s1076
        %v1078 = vmul.f32 %v947, %v1077
        %v1079 = vadd.f32 %v1075, %v1078
        %s1080 = sld [smem:[#allocation13 + $0x3]]
        %v1081 = vstv %s1080
        %v1082 = vadd.f32 %v1079, %v1081
        %v1083 = vtanh.pop %v1082
        %v1084 = vadd.f32 %v1083, 1.0
        %v1085 = vmul.f32 %v1084, 0.5
        %1086 = vst.msk [vmem:[%s509] sm:$0xff] %vm651, %v1022
        %1087 = vst.msk [vmem:[%s509 + $0x8] sm:$0xff] %vm651, %v1043
        %1088 = vst.msk [vmem:[%s509 + $0x10] sm:$0xff] %vm651, %v1064
        %1089 = vst.msk [vmem:[%s509 + $0x18] sm:$0xff] %vm651, %v1085
        %v1090 = vld [vmem:[%s457] sm:$0xf]
        %v1091 = vld [vmem:[%s457 + $0x4] sm:$0xf]
        %v1092 = vld [vmem:[%s457 + $0x8] sm:$0xf]
        %v1093 = vld [vmem:[%s457 + $0xc] sm:$0xf]
        %v1094 = vunpack.c.l.bf16 %v1090
        %v1095 = vunpack.c.l.bf16 %v1091
        %v1096 = vunpack.c.l.bf16 %v1092
        %v1097 = vunpack.c.l.bf16 %v1093
        %vm1098 = vcmp.gt.f32.partialorder %v1094, %v1022
        %vm1099 = vcmp.gt.f32.partialorder %v1095, %v1043
        %vm1100 = vcmp.gt.f32.partialorder %v1096, %v1064
        %vm1101 = vcmp.gt.f32.partialorder %v1097, %v1085
        %v1102 = vsel %vm1098, %v994, 0.0
        %v1103 = vsel %vm1099, %v995, 0.0
        %v1104 = vsel %vm1100, %v996, 0.0
        %v1105 = vsel %vm1101, %v997, 0.0
        %v1106 = vld [vmem:[#allocation4] sm:$0xff]
        %v1108 = vsel %vm651, %v1102, 0
        %1110 = vmatprep.subr.mxu0 0.0
        %1111 = vmatpush1.msra.mxu0 0.0
        %1112 = vmatprep.subr.mxu0 0.0
        %1113 = vmatpush1.msra.mxu0 0.0
        %1114 = vmatprep.subr.mxu0 0.0
        %1115 = vmatpush1.msra.mxu0 0.0
        %1116 = vmatprep.subr.mxu0 0.0
        %1117 = vmatpush1.msra.mxu0 0.0
        %1118 = vmatprep.subr.mxu0 0.0
        %1119 = vmatpush1.msra.mxu0 0.0
        %1120 = vmatprep.subr.mxu0 0.0
        %1121 = vmatpush1.msra.mxu0 0.0
        %1122 = vmatprep.subr.mxu0 0.0
        %1123 = vmatpush1.msra.mxu0 0.0
        %1124 = vmatprep.subr.mxu0 0.0
        %1125 = vmatpush1.msra.mxu0 0.0
        %1126 = vmatprep.subr.mxu0 0.0
        %1127 = vmatpush1.msra.mxu0 0.0
        %1128 = vmatprep.subr.mxu0 0.0
        %1129 = vmatpush1.msra.mxu0 0.0
        %1130 = vmatprep.subr.mxu0 0.0
        %1131 = vmatpush1.msra.mxu0 0.0
        %1132 = vmatprep.subr.mxu0 0.0
        %1133 = vmatpush1.msra.mxu0 0.0
        %1134 = vmatprep.subr.mxu0 0.0
        %1135 = vmatpush1.msra.mxu0 0.0
        %1136 = vmatprep.subr.mxu0 0.0
        %1137 = vmatpush1.msra.mxu0 0.0
        %1138 = vmatprep.subr.mxu0 0.0
        %1139 = vmatpush1.msra.mxu0 0.0
        %1140 = vmatprep.subr.mxu0 0.0
        %1141 = vmatpush1.msra.mxu0 %v1106
        %1142 = vmatprep.subr.mxu0 0.0
        %1143 = vmatpush2.msra.mxu0 0.0
        %1144 = vmatprep.subr.mxu0 0.0
        %1145 = vmatpush2.msra.mxu0 0.0
        %1146 = vmatprep.subr.mxu0 0.0
        %1147 = vmatpush2.msra.mxu0 0.0
        %1148 = vmatprep.subr.mxu0 0.0
        %1149 = vmatpush2.msra.mxu0 0.0
        %1150 = vmatprep.subr.mxu0 0.0
        %1151 = vmatpush2.msra.mxu0 0.0
        %1152 = vmatprep.subr.mxu0 0.0
        %1153 = vmatpush2.msra.mxu0 0.0
        %1154 = vmatprep.subr.mxu0 0.0
        %1155 = vmatpush2.msra.mxu0 0.0
        %1156 = vmatprep.subr.mxu0 0.0
        %1157 = vmatpush2.msra.mxu0 0.0
        %1158 = vmatprep.subr.mxu0 0.0
        %1159 = vmatpush2.msra.mxu0 0.0
        %1160 = vmatprep.subr.mxu0 0.0
        %1161 = vmatpush2.msra.mxu0 0.0
        %1162 = vmatprep.subr.mxu0 0.0
        %1163 = vmatpush2.msra.mxu0 0.0
        %1164 = vmatprep.subr.mxu0 0.0
        %1165 = vmatpush2.msra.mxu0 0.0
        %1166 = vmatprep.subr.mxu0 0.0
        %1167 = vmatpush2.msra.mxu0 0.0
        %1168 = vmatprep.subr.mxu0 0.0
        %1169 = vmatpush2.msra.mxu0 0.0
        %1170 = vmatprep.subr.mxu0 0.0
        %1171 = vmatpush2.msra.mxu0 0.0
        %1172 = vmatprep.subr.mxu0 0.0
        %1173 = vmatpush2.msra.mxu0 0.0
        %1174 = vmatprep.mubr.f32.mxu0 0.0
        %1175 = vmatmul.mubr.f32.gmra.mxu0 %v1108
        %v1176 = vpop.f32.mrf.mxu0
        %v1177 = vadd.f32 0.0, %v1176
        %v1178 = vpop.f32.mrf.mxu0
        %1179 = vdwg.mxu0
        %1181 = vrot.lane.b32.xlu0 %v1106, 120
        %v1182 = vpop.permute.xlu0 %1181
        %v1185 = vsel %vm651, %v1103, 0
        %1187 = vmatprep.subr.mxu0 0.0
        %1188 = vmatpush1.msra.mxu0 0.0
        %1189 = vmatprep.subr.mxu0 0.0
        %1190 = vmatpush1.msra.mxu0 0.0
        %1191 = vmatprep.subr.mxu0 0.0
        %1192 = vmatpush1.msra.mxu0 0.0
        %1193 = vmatprep.subr.mxu0 0.0
        %1194 = vmatpush1.msra.mxu0 0.0
        %1195 = vmatprep.subr.mxu0 0.0
        %1196 = vmatpush1.msra.mxu0 0.0
        %1197 = vmatprep.subr.mxu0 0.0
        %1198 = vmatpush1.msra.mxu0 0.0
        %1199 = vmatprep.subr.mxu0 0.0
        %1200 = vmatpush1.msra.mxu0 0.0
        %1201 = vmatprep.subr.mxu0 0.0
        %1202 = vmatpush1.msra.mxu0 0.0
        %1203 = vmatprep.subr.mxu0 0.0
        %1204 = vmatpush1.msra.mxu0 0.0
        %1205 = vmatprep.subr.mxu0 0.0
        %1206 = vmatpush1.msra.mxu0 0.0
        %1207 = vmatprep.subr.mxu0 0.0
        %1208 = vmatpush1.msra.mxu0 0.0
        %1209 = vmatprep.subr.mxu0 0.0
        %1210 = vmatpush1.msra.mxu0 0.0
        %1211 = vmatprep.subr.mxu0 0.0
        %1212 = vmatpush1.msra.mxu0 0.0
        %1213 = vmatprep.subr.mxu0 0.0
        %1214 = vmatpush1.msra.mxu0 0.0
        %1215 = vmatprep.subr.mxu0 0.0
        %1216 = vmatpush1.msra.mxu0 0.0
        %1217 = vmatprep.subr.mxu0 0.0
        %1218 = vmatpush1.msra.mxu0 %v1182
        %1219 = vmatprep.subr.mxu0 0.0
        %1220 = vmatpush2.msra.mxu0 0.0
        %1221 = vmatprep.subr.mxu0 0.0
        %1222 = vmatpush2.msra.mxu0 0.0
        %1223 = vmatprep.subr.mxu0 0.0
        %1224 = vmatpush2.msra.mxu0 0.0
        %1225 = vmatprep.subr.mxu0 0.0
        %1226 = vmatpush2.msra.mxu0 0.0
        %1227 = vmatprep.subr.mxu0 0.0
        %1228 = vmatpush2.msra.mxu0 0.0
        %1229 = vmatprep.subr.mxu0 0.0
        %1230 = vmatpush2.msra.mxu0 0.0
        %1231 = vmatprep.subr.mxu0 0.0
        %1232 = vmatpush2.msra.mxu0 0.0
        %1233 = vmatprep.subr.mxu0 0.0
        %1234 = vmatpush2.msra.mxu0 0.0
        %1235 = vmatprep.subr.mxu0 0.0
        %1236 = vmatpush2.msra.mxu0 0.0
        %1237 = vmatprep.subr.mxu0 0.0
        %1238 = vmatpush2.msra.mxu0 0.0
        %1239 = vmatprep.subr.mxu0 0.0
        %1240 = vmatpush2.msra.mxu0 0.0
        %1241 = vmatprep.subr.mxu0 0.0
        %1242 = vmatpush2.msra.mxu0 0.0
        %1243 = vmatprep.subr.mxu0 0.0
        %1244 = vmatpush2.msra.mxu0 0.0
        %1245 = vmatprep.subr.mxu0 0.0
        %1246 = vmatpush2.msra.mxu0 0.0
        %1247 = vmatprep.subr.mxu0 0.0
        %1248 = vmatpush2.msra.mxu0 0.0
        %1249 = vmatprep.subr.mxu0 0.0
        %1250 = vmatpush2.msra.mxu0 0.0
        %1251 = vmatprep.mubr.f32.mxu0 0.0
        %1252 = vmatmul.mubr.f32.gmra.mxu0 %v1185
        %v1253 = vpop.f32.mrf.mxu0
        %v1254 = vadd.f32 0.0, %v1253
        %v1255 = vpop.f32.mrf.mxu0
        %1256 = vdwg.mxu0
        %1257 = vrot.lane.b32.xlu0 %v1106, 112
        %v1258 = vpop.permute.xlu0 %1257
        %v1261 = vsel %vm651, %v1104, 0
        %1263 = vmatprep.subr.mxu0 0.0
        %1264 = vmatpush1.msra.mxu0 0.0
        %1265 = vmatprep.subr.mxu0 0.0
        %1266 = vmatpush1.msra.mxu0 0.0
        %1267 = vmatprep.subr.mxu0 0.0
        %1268 = vmatpush1.msra.mxu0 0.0
        %1269 = vmatprep.subr.mxu0 0.0
        %1270 = vmatpush1.msra.mxu0 0.0
        %1271 = vmatprep.subr.mxu0 0.0
        %1272 = vmatpush1.msra.mxu0 0.0
        %1273 = vmatprep.subr.mxu0 0.0
        %1274 = vmatpush1.msra.mxu0 0.0
        %1275 = vmatprep.subr.mxu0 0.0
        %1276 = vmatpush1.msra.mxu0 0.0
        %1277 = vmatprep.subr.mxu0 0.0
        %1278 = vmatpush1.msra.mxu0 0.0
        %1279 = vmatprep.subr.mxu0 0.0
        %1280 = vmatpush1.msra.mxu0 0.0
        %1281 = vmatprep.subr.mxu0 0.0
        %1282 = vmatpush1.msra.mxu0 0.0
        %1283 = vmatprep.subr.mxu0 0.0
        %1284 = vmatpush1.msra.mxu0 0.0
        %1285 = vmatprep.subr.mxu0 0.0
        %1286 = vmatpush1.msra.mxu0 0.0
        %1287 = vmatprep.subr.mxu0 0.0
        %1288 = vmatpush1.msra.mxu0 0.0
        %1289 = vmatprep.subr.mxu0 0.0
        %1290 = vmatpush1.msra.mxu0 0.0
        %1291 = vmatprep.subr.mxu0 0.0
        %1292 = vmatpush1.msra.mxu0 0.0
        %1293 = vmatprep.subr.mxu0 0.0
        %1294 = vmatpush1.msra.mxu0 %v1258
        %1295 = vmatprep.subr.mxu0 0.0
        %1296 = vmatpush2.msra.mxu0 0.0
        %1297 = vmatprep.subr.mxu0 0.0
        %1298 = vmatpush2.msra.mxu0 0.0
        %1299 = vmatprep.subr.mxu0 0.0
        %1300 = vmatpush2.msra.mxu0 0.0
        %1301 = vmatprep.subr.mxu0 0.0
        %1302 = vmatpush2.msra.mxu0 0.0
        %1303 = vmatprep.subr.mxu0 0.0
        %1304 = vmatpush2.msra.mxu0 0.0
        %1305 = vmatprep.subr.mxu0 0.0
        %1306 = vmatpush2.msra.mxu0 0.0
        %1307 = vmatprep.subr.mxu0 0.0
        %1308 = vmatpush2.msra.mxu0 0.0
        %1309 = vmatprep.subr.mxu0 0.0
        %1310 = vmatpush2.msra.mxu0 0.0
        %1311 = vmatprep.subr.mxu0 0.0
        %1312 = vmatpush2.msra.mxu0 0.0
        %1313 = vmatprep.subr.mxu0 0.0
        %1314 = vmatpush2.msra.mxu0 0.0
        %1315 = vmatprep.subr.mxu0 0.0
        %1316 = vmatpush2.msra.mxu0 0.0
        %1317 = vmatprep.subr.mxu0 0.0
        %1318 = vmatpush2.msra.mxu0 0.0
        %1319 = vmatprep.subr.mxu0 0.0
        %1320 = vmatpush2.msra.mxu0 0.0
        %1321 = vmatprep.subr.mxu0 0.0
        %1322 = vmatpush2.msra.mxu0 0.0
        %1323 = vmatprep.subr.mxu0 0.0
        %1324 = vmatpush2.msra.mxu0 0.0
        %1325 = vmatprep.subr.mxu0 0.0
        %1326 = vmatpush2.msra.mxu0 0.0
        %1327 = vmatprep.mubr.f32.mxu0 0.0
        %1328 = vmatmul.mubr.f32.gmra.mxu0 %v1261
        %v1329 = vpop.f32.mrf.mxu0
        %v1330 = vadd.f32 0.0, %v1329
        %v1331 = vpop.f32.mrf.mxu0
        %1332 = vdwg.mxu0
        %1333 = vrot.lane.b32.xlu0 %v1106, 104
        %v1334 = vpop.permute.xlu0 %1333
        %v1337 = vsel %vm651, %v1105, 0
        %1339 = vmatprep.subr.mxu0 0.0
        %1340 = vmatpush1.msra.mxu0 0.0
        %1341 = vmatprep.subr.mxu0 0.0
        %1342 = vmatpush1.msra.mxu0 0.0
        %1343 = vmatprep.subr.mxu0 0.0
        %1344 = vmatpush1.msra.mxu0 0.0
        %1345 = vmatprep.subr.mxu0 0.0
        %1346 = vmatpush1.msra.mxu0 0.0
        %1347 = vmatprep.subr.mxu0 0.0
        %1348 = vmatpush1.msra.mxu0 0.0
        %1349 = vmatprep.subr.mxu0 0.0
        %1350 = vmatpush1.msra.mxu0 0.0
        %1351 = vmatprep.subr.mxu0 0.0
        %1352 = vmatpush1.msra.mxu0 0.0
        %1353 = vmatprep.subr.mxu0 0.0
        %1354 = vmatpush1.msra.mxu0 0.0
        %1355 = vmatprep.subr.mxu0 0.0
        %1356 = vmatpush1.msra.mxu0 0.0
        %1357 = vmatprep.subr.mxu0 0.0
        %1358 = vmatpush1.msra.mxu0 0.0
        %1359 = vmatprep.subr.mxu0 0.0
        %1360 = vmatpush1.msra.mxu0 0.0
        %1361 = vmatprep.subr.mxu0 0.0
        %1362 = vmatpush1.msra.mxu0 0.0
        %1363 = vmatprep.subr.mxu0 0.0
        %1364 = vmatpush1.msra.mxu0 0.0
        %1365 = vmatprep.subr.mxu0 0.0
        %1366 = vmatpush1.msra.mxu0 0.0
        %1367 = vmatprep.subr.mxu0 0.0
        %1368 = vmatpush1.msra.mxu0 0.0
        %1369 = vmatprep.subr.mxu0 0.0
        %1370 = vmatpush1.msra.mxu0 %v1334
        %1371 = vmatprep.subr.mxu0 0.0
        %1372 = vmatpush2.msra.mxu0 0.0
        %1373 = vmatprep.subr.mxu0 0.0
        %1374 = vmatpush2.msra.mxu0 0.0
        %1375 = vmatprep.subr.mxu0 0.0
        %1376 = vmatpush2.msra.mxu0 0.0
        %1377 = vmatprep.subr.mxu0 0.0
        %1378 = vmatpush2.msra.mxu0 0.0
        %1379 = vmatprep.subr.mxu0 0.0
        %1380 = vmatpush2.msra.mxu0 0.0
        %1381 = vmatprep.subr.mxu0 0.0
        %1382 = vmatpush2.msra.mxu0 0.0
        %1383 = vmatprep.subr.mxu0 0.0
        %1384 = vmatpush2.msra.mxu0 0.0
        %1385 = vmatprep.subr.mxu0 0.0
        %1386 = vmatpush2.msra.mxu0 0.0
        %1387 = vmatprep.subr.mxu0 0.0
        %1388 = vmatpush2.msra.mxu0 0.0
        %1389 = vmatprep.subr.mxu0 0.0
        %1390 = vmatpush2.msra.mxu0 0.0
        %1391 = vmatprep.subr.mxu0 0.0
        %1392 = vmatpush2.msra.mxu0 0.0
        %1393 = vmatprep.subr.mxu0 0.0
        %1394 = vmatpush2.msra.mxu0 0.0
        %1395 = vmatprep.subr.mxu0 0.0
        %1396 = vmatpush2.msra.mxu0 0.0
        %1397 = vmatprep.subr.mxu0 0.0
        %1398 = vmatpush2.msra.mxu0 0.0
        %1399 = vmatprep.subr.mxu0 0.0
        %1400 = vmatpush2.msra.mxu0 0.0
        %1401 = vmatprep.subr.mxu0 0.0
        %1402 = vmatpush2.msra.mxu0 0.0
        %1403 = vmatprep.mubr.f32.mxu0 0.0
        %1404 = vmatmul.mubr.f32.gmra.mxu0 %v1337
        %v1405 = vpop.f32.mrf.mxu0
        %v1406 = vadd.f32 0.0, %v1405
        %v1407 = vpop.f32.mrf.mxu0
        %1408 = vdwg.mxu0
        %1410 = vrot.lane.b32.xlu0 %v1254, 8
        %v1411 = vpop.permute.xlu0 %1410
        %1414 = vrot.lane.b32.xlu0 %v1330, 16
        %v1415 = vpop.permute.xlu0 %1414
        %1418 = vrot.lane.b32.xlu0 %v1406, 24
        %v1419 = vpop.permute.xlu0 %1418
        %v1421 = vsel %vm651, %v1177, %v1411
        %vm1422 = vcmask 130048
        %v1423 = vsel %vm1422, %v1421, %v1415
        %vm1424 = vcmask 195584
        %v1425 = vsel %vm1424, %v1423, %v1419
        %v1426 = vld [vmem:[#allocation11] sm:$0xff]
        %v1427 = vld [vmem:[#allocation11 + $0x8] sm:$0xff]
        %v1428 = vld [vmem:[#allocation11 + $0x10] sm:$0xff]
        %v1429 = vld [vmem:[#allocation11 + $0x18] sm:$0xff]
        %v1430 = vld [vmem:[%s4] sm:$0x1]
        %v1432 = vlaneseq
        %v1433 = vshrl.u32 %v1432, 7
        %v1434 = vsub.s32 0, %v1433
        %v1435 = vrot.slane %v1430, %v1434
        %vm1437 = vcmask 261120
        %v1439 = vsel %vm1437, %v1425, 0
        %1441 = vmatprep.subr.mxu0 0.0
        %1442 = vmatpush1.msra.mxu0 0.0
        %1443 = vmatprep.subr.mxu0 0.0
        %1444 = vmatpush1.msra.mxu0 0.0
        %1445 = vmatprep.subr.mxu0 0.0
        %1446 = vmatpush1.msra.mxu0 0.0
        %1447 = vmatprep.subr.mxu0 0.0
        %1448 = vmatpush1.msra.mxu0 0.0
        %1449 = vmatprep.subr.mxu0 0.0
        %1450 = vmatpush1.msra.mxu0 0.0
        %1451 = vmatprep.subr.mxu0 0.0
        %1452 = vmatpush1.msra.mxu0 0.0
        %1453 = vmatprep.subr.mxu0 0.0
        %1454 = vmatpush1.msra.mxu0 0.0
        %1455 = vmatprep.subr.mxu0 0.0
        %1456 = vmatpush1.msra.mxu0 0.0
        %1457 = vmatprep.subr.mxu0 0.0
        %1458 = vmatpush1.msra.mxu0 0.0
        %1459 = vmatprep.subr.mxu0 0.0
        %1460 = vmatpush1.msra.mxu0 0.0
        %1461 = vmatprep.subr.mxu0 0.0
        %1462 = vmatpush1.msra.mxu0 0.0
        %1463 = vmatprep.subr.mxu0 0.0
        %1464 = vmatpush1.msra.mxu0 0.0
        %1465 = vmatprep.subr.mxu0 0.0
        %1466 = vmatpush1.msra.mxu0 %v1429
        %1467 = vmatprep.subr.mxu0 0.0
        %1468 = vmatpush1.msra.mxu0 %v1428
        %1469 = vmatprep.subr.mxu0 0.0
        %1470 = vmatpush1.msra.mxu0 %v1427
        %1471 = vmatprep.subr.mxu0 0.0
        %1472 = vmatpush1.msra.mxu0 %v1426
        %1473 = vmatprep.subr.mxu0 0.0
        %1474 = vmatpush2.msra.mxu0 0.0
        %1475 = vmatprep.subr.mxu0 0.0
        %1476 = vmatpush2.msra.mxu0 0.0
        %1477 = vmatprep.subr.mxu0 0.0
        %1478 = vmatpush2.msra.mxu0 0.0
        %1479 = vmatprep.subr.mxu0 0.0
        %1480 = vmatpush2.msra.mxu0 0.0
        %1481 = vmatprep.subr.mxu0 0.0
        %1482 = vmatpush2.msra.mxu0 0.0
        %1483 = vmatprep.subr.mxu0 0.0
        %1484 = vmatpush2.msra.mxu0 0.0
        %1485 = vmatprep.subr.mxu0 0.0
        %1486 = vmatpush2.msra.mxu0 0.0
        %1487 = vmatprep.subr.mxu0 0.0
        %1488 = vmatpush2.msra.mxu0 0.0
        %1489 = vmatprep.subr.mxu0 0.0
        %1490 = vmatpush2.msra.mxu0 0.0
        %1491 = vmatprep.subr.mxu0 0.0
        %1492 = vmatpush2.msra.mxu0 0.0
        %1493 = vmatprep.subr.mxu0 0.0
        %1494 = vmatpush2.msra.mxu0 0.0
        %1495 = vmatprep.subr.mxu0 0.0
        %1496 = vmatpush2.msra.mxu0 0.0
        %1497 = vmatprep.subr.mxu0 0.0
        %1498 = vmatpush2.msra.mxu0 0.0
        %1499 = vmatprep.subr.mxu0 0.0
        %1500 = vmatpush2.msra.mxu0 0.0
        %1501 = vmatprep.subr.mxu0 0.0
        %1502 = vmatpush2.msra.mxu0 0.0
        %1503 = vmatprep.subr.mxu0 0.0
        %1504 = vmatpush2.msra.mxu0 0.0
        %1505 = vmatprep.mubr.f32.mxu0 0.0
        %1506 = vmatmul.mubr.f32.gmra.mxu0 %v1439
        %v1507 = vpop.f32.mrf.mxu0
        %v1508 = vadd.f32 %v1435, %v1507
        %v1509 = vpop.f32.mrf.mxu0
        %1510 = vdwg.mxu0
        %1511 = vst.msk [vmem:[%s495] sm:$0xff] %vm1437, %v1508
        %s1512 = sand.u32 %s239, 1
        %s1513 = scalar_lea.sflag [#allocation7], %s1512
        %s1514 = sand.u32 %s239, 1
        %s1515 = smul.addr %s1514, 8
        %s1516 = scalar_lea.vmem [#allocation17], %s1515
        %s1517 = sand.u32 %s37, 1
        %s1518 = scalar_lea.sflag [#allocation19], %s1517
        %s1519 = sand.u32 %s267, 1
        %s1520 = smul.addr %s1519, 32
        %s1521 = scalar_lea.vmem [#allocation18], %s1520
        %s1522 = sand.u32 %s37, 1
        %s1523 = scalar_lea.sflag [#allocation19], %s1522
        %s1524 = sand.u32 %s295, 1
        %s1525 = smul.addr %s1524, 32
        %s1526 = scalar_lea.vmem [#allocation20], %s1525
        // Predicated region
        $region81: #{tpu_custom_call.1} parent=51 // pred_check
          %p1527 = pneg %p249
        $region82: #{tpu_custom_call.1} parent=51 // pred_check_branch
          %1529 = sbr.rel (%p1527) target = $region84
        $region83: #{tpu_custom_call.1} parent=51 // pred_region
          %s1531 = ssub.s32 128, 128
          %1532 = vsyncadd %s1513, %s1531
          %s1533 = sadd.s32 %s42, %s41
          %s1534 = smul.addr %s1533, 128
          %s1535 = scalar_lea.hbm %s8, %s1534
          %s1537 = sshll.u32 %s1516, 4
          %s1538 = int_to_ptr.vmem [resolvable:$true] %s1537
          %1540 = dma.vmem_to_hbm [thread:$0]  %s1538, 128, %s1535, %s1513
        $region84: #{tpu_custom_call.1} parent=51 // pred_fallthru
          _
        // Predicated region
        $region85: #{tpu_custom_call.1} parent=51 // pred_check
          %p1541 = pneg %p277
        $region86: #{tpu_custom_call.1} parent=51 // pred_check_branch
          %1543 = sbr.rel (%p1541) target = $region88
        $region87: #{tpu_custom_call.1} parent=51 // pred_region
          %s1545 = ssub.s32 512, 512
          %1546 = vsyncadd %s1518, %s1545
          %s1547 = smul.addr %s41, 4
          %s1548 = sadd.s32 %s42, %s1547
          %s1549 = smul.addr %s1548, 128
          %s1550 = scalar_lea.hbm %s9, %s1549
          %s1551 = sshll.u32 %s1521, 4
          %s1552 = int_to_ptr.vmem [resolvable:$true] %s1551
          %1557 = dma.vmem_to_hbm [thread:$0]  %s1552, 512, %s1550, %s1518, 128, 128, 8
        $region88: #{tpu_custom_call.1} parent=51 // pred_fallthru
          _
        // Predicated region
        $region89: #{tpu_custom_call.1} parent=51 // pred_check
          %p1558 = pneg %p305
        $region90: #{tpu_custom_call.1} parent=51 // pred_check_branch
          %1560 = sbr.rel (%p1558) target = $region92
        $region91: #{tpu_custom_call.1} parent=51 // pred_region
          %s1562 = ssub.s32 512, 512
          %1563 = vsyncadd %s1523, %s1562
          %s1564 = smul.addr %s41, 4
          %s1565 = sadd.s32 %s42, %s1564
          %s1566 = smul.addr %s1565, 128
          %s1567 = scalar_lea.hbm %s10, %s1566
          %s1568 = sshll.u32 %s1526, 4
          %s1569 = int_to_ptr.vmem [resolvable:$true] %s1568
          %1574 = dma.vmem_to_hbm [thread:$0]  %s1569, 512, %s1567, %s1523, 128, 128, 8
        $region92: #{tpu_custom_call.1} parent=51 // pred_fallthru
          _
      $region52: #{tpu_custom_call.1} parent=5 // pred_fallthru
        _
      %p1575 = scmp.le.s32.totalorder 2, %s32
      // Predicated region
      $region93: #{tpu_custom_call.1} parent=5 // pred_check
        %p1576 = pneg %p1575
      $region94: #{tpu_custom_call.1} parent=5 // pred_check_branch
        %1578 = sbr.rel (%p1576) target = $region96
      $region95: #{tpu_custom_call.1} parent=5 // pred_region
        %s1579 = ssub.s32 %s32, 2
        // Predicated region
        $region97: #{tpu_custom_call.1} parent=95 // pred_check
          %p1580 = pneg %p255
        $region98: #{tpu_custom_call.1} parent=95 // pred_check_branch
          %1582 = sbr.rel (%p1580) target = $region100
        $region99: #{tpu_custom_call.1} parent=95 // pred_region
          %s1583 = sand.u32 %s240, 1
          %s1584 = scalar_lea.sflag [#allocation7], %s1583
          %s1585 = sand.u32 %s240, 1
          %s1586 = smul.addr %s1585, 8
          %s1587 = scalar_lea.vmem [#allocation17], %s1586
          %1588 = dma.done %s1584, 128
        $region100: #{tpu_custom_call.1} parent=95 // pred_fallthru
          _
        // Predicated region
        $region101: #{tpu_custom_call.1} parent=95 // pred_check
          %p1589 = pneg %p283
        $region102: #{tpu_custom_call.1} parent=95 // pred_check_branch
          %1591 = sbr.rel (%p1589) target = $region104
        $region103: #{tpu_custom_call.1} parent=95 // pred_region
          %s1592 = sand.u32 %s38, 1
          %s1593 = scalar_lea.sflag [#allocation19], %s1592
          %s1594 = sand.u32 %s268, 1
          %s1595 = smul.addr %s1594, 32
          %s1596 = scalar_lea.vmem [#allocation18], %s1595
          %1597 = dma.done %s1593, 512
        $region104: #{tpu_custom_call.1} parent=95 // pred_fallthru
          _
        // Predicated region
        $region105: #{tpu_custom_call.1} parent=95 // pred_check
          %p1598 = pneg %p311
        $region106: #{tpu_custom_call.1} parent=95 // pred_check_branch
          %1600 = sbr.rel (%p1598) target = $region108
        $region107: #{tpu_custom_call.1} parent=95 // pred_region
          %s1601 = sand.u32 %s38, 1
          %s1602 = scalar_lea.sflag [#allocation19], %s1601
          %s1603 = sand.u32 %s296, 1
          %s1604 = smul.addr %s1603, 32
          %s1605 = scalar_lea.vmem [#allocation20], %s1604
          %1606 = dma.done %s1602, 512
        $region108: #{tpu_custom_call.1} parent=95 // pred_fallthru
          _
      $region96: #{tpu_custom_call.1} parent=5 // pred_fallthru
        _
    $region6: #{tpu_custom_call.1} parent=1 // loop_footer
      %s36 = sadd.s32 1, %s32
    $region7: #{tpu_custom_call.1} parent=1 // loop_footer_branch
      %31 = sbr.rel target = $region3
    $region8: #{tpu_custom_call.1} parent=1 // loop_exit
      _
    %1607 = vsyncpa [#allocation6], 1
    %s1608 = scalar_lea.sflag [#allocation6], 1
    %1609 = vsyncpa %s1608, 1
    %1610 = vsyncpa [#allocation10], 1
    %1611 = vsyncpa [#allocation16], 1
    %s1612 = scalar_lea.sflag [#allocation16], 1
    %1613 = vsyncpa %s1612, 1
    %1614 = vsyncpa [#allocation7], 1
    %s1615 = scalar_lea.sflag [#allocation7], 1
    %1616 = vsyncpa %s1615, 1
    %1617 = vsyncpa [#allocation19], 1
    %s1618 = scalar_lea.sflag [#allocation19], 1
    %1619 = vsyncpa %s1618, 1
    %1620 = vsyncpa [#allocation8], 1
    %s1621 = scalar_lea.sflag [#allocation8], 1
    %1622 = vsyncpa %s1621, 1
    %1623 = vsyncpa [#allocation14], 1

</llo_original>
